<compile_context>
chip_gen: v6e
topology: v6e:2x2x1
jax: 0.10.0
libtpu: 0.0.40
codegen_flags: <defaults>
</compile_context>

<pallas_src>
import numpy as np

import jax
import jax.numpy as jnp
from jax.experimental import pallas as pl
from jax.experimental.pallas import tpu as pltpu


def _head_kernel(x_ref, pool_ref, w_ref, shift_ref, out_ref):
    """One batch block (BB elements) per grid step; everything VMEM-resident.

    x_ref:     (BB*H*W, C)      -- NHWC-flattened feature rows for this batch block
    pool_ref:  (5*BB, BB*H*W)   -- block-diagonal pooling weights, strip-major ordering:
                                   row s*BB + b  = horizontal strip s of element b (s < 4)
                                   row 4*BB + b  = global average pool of element b
    w_ref:     (C, F)           -- BN-folded 1x1 conv weight, pre-transposed (canonical RHS)
    shift_ref: (1, F) f32       -- BatchNorm shift (beta - running_mean * scale)
    out_ref:   (BB, C + 4*F) f32 -- cat((gfnorm, hnorm), 1) for this batch block
    """
    C, F = w_ref.shape
    BB = out_ref.shape[0]
    n_strips = pool_ref.shape[0] // BB - 1

    # All pooling (4 strips + global) for all BB elements as ONE canonical MXU matmul:
    # (5*BB, BB*HW) x (BB*HW, C) -> (5*BB, C), f32 accumulation.
    pooled = jax.lax.dot_general(
        pool_ref[...], x_ref[...],
        dimension_numbers=(((1,), (0,)), ((), ())),
        preferred_element_type=jnp.float32)

    strips = pooled[:n_strips * BB, :]              # (4*BB, C), row index = s*BB + b
    gf = pooled[n_strips * BB:, :]                  # (BB, C)   global average pool

    # --- global branch: L2 normalize (EUP rsqrt), store to lanes [0, C) -------------------
    g_ss = jnp.sum(gf * gf, axis=-1, keepdims=True)
    g_inv = jax.lax.rsqrt(jnp.maximum(g_ss, 1e-24))
    out_ref[:, :C] = (gf * g_inv).astype(out_ref.dtype)

    # --- horizontal branch: fused 1x1 conv for all strips of all BB elements (M = 4*BB), ---
    # --- BN shift + ReLU, then per-element L2 norm over the concatenated 4*F features ------
    # hdrop (Dropout) is identity in eval mode.
    h = jax.lax.dot_general(
        strips.astype(w_ref.dtype), w_ref[...],
        dimension_numbers=(((1,), (0,)), ((), ())),
        preferred_element_type=jnp.float32)         # (4*BB, F)
    h = jnp.maximum(h + shift_ref[...], 0.0)

    hsq = jnp.sum(h * h, axis=-1, keepdims=True)    # (4*BB, 1)
    hss = hsq[0:BB]
    for s in range(1, n_strips):
        hss = hss + hsq[s * BB:(s + 1) * BB]        # (BB, 1): sum over the 4 strips per elem
    h_inv = jax.lax.rsqrt(jnp.maximum(hss, 1e-24))  # (BB, 1)

    for s in range(n_strips):
        # offsets C + s*F are multiples of 128 for (C=1024, F=256) -> lane-aligned stores
        out_ref[:, C + s * F:C + (s + 1) * F] = \
            (h[s * BB:(s + 1) * BB, :] * h_inv).astype(out_ref.dtype)


def _pick_block_batch(batch):
    """Largest per-step batch block (<= 8) that still leaves >= 2 grid steps (v7x: 2 TCs)."""
    if batch <= 1:
        return 1
    best = 1
    for bb in range(1, min(batch, 8) + 1):
        if batch % bb == 0 and batch // bb >= 2:
            best = bb
    return best


def densenet121_4_head(x_nchw, conv_w, bn_gamma, bn_beta, bn_rmean, bn_rvar,
                       bn_eps=1e-5, compute_dtype=jnp.float32):
    """Wrapper: NCHW feature map -> cat((gfnorm, hnorm), 1) of shape (B, C + 4*F).

    compute_dtype: dtype of x / pooling matrix / conv weight fed to the MXU (accumulation is
    always f32).  Use jnp.bfloat16 to halve HBM traffic (recommended on v5e).
    """
    B, C, H, W = x_nchw.shape
    F = conv_w.shape[0]
    # Original code is Python 2: `sx = hx.size(2) / 4` is integer division.
    sx = H // 4
    kx = H - sx * 3
    n_strips = (H - kx) // sx + 1
    assert n_strips == 4, "avg_pool2d strip count must be 4 (chunk(4, 2))"

    HW = H * W
    BB = _pick_block_batch(B)
    n_steps = B // BB

    # One-time NCHW -> NHWC-flat transpose in XLA (cheap, done once before the pallas_call)
    # so both in-kernel matmuls are canonical and lanes are dense (minor dim = C = 1024).
    x = jnp.transpose(x_nchw, (0, 2, 3, 1)).reshape(n_steps, BB * HW, C).astype(compute_dtype)

    # Fold BatchNorm (eval running stats) into the 1x1 conv weight; keep only the shift.
    bn_scale = (bn_gamma * jax.lax.rsqrt(bn_rvar + bn_eps)).astype(jnp.float32)         # (F,)
    bn_shift = (bn_beta - bn_rmean * bn_scale).reshape(1, F).astype(jnp.float32)        # (1, F)
    # Pre-transposed to (C, F): canonical RHS for the conv matmul (no in-kernel relayout).
    w_cf = (conv_w.reshape(F, C).astype(jnp.float32) * bn_scale[:, None]).T \
        .astype(compute_dtype)                                                          # (C, F)

    # Block-diagonal pooling matrix (strip-major): rows 0..4*BB-1 = strips, 4*BB..5*BB-1 = global.
    P = np.zeros((5 * BB, BB * HW), np.float32)
    for b in range(BB):
        col0 = b * HW
        for s in range(n_strips):
            P[s * BB + b, col0 + s * sx * W: col0 + (s * sx + kx) * W] = 1.0 / (kx * W)
        P[n_strips * BB + b, col0: col0 + HW] = 1.0 / HW
    P = jnp.asarray(P, compute_dtype)

    out_dim = C + n_strips * F
    # Note: lane-aligned (unmasked) strip stores require C % 128 == 0 and F % 128 == 0
    # (true for the module's 1024 / 256 config); other F values still work, just slower.
    out = pl.pallas_call(
        _head_kernel,
        out_shape=jax.ShapeDtypeStruct((n_steps, BB, out_dim), jnp.float32),
        grid=(n_steps,),
        in_specs=[
            pl.BlockSpec((None, BB * HW, C), lambda i: (i, 0, 0)),     # batch block of x rows
            pl.BlockSpec((5 * BB, BB * HW), lambda i: (0, 0)),         # pooling matrix (resident)
            pl.BlockSpec((C, F), lambda i: (0, 0)),                    # BN-folded conv weight
            pl.BlockSpec((1, F), lambda i: (0, 0)),                    # BN shift
        ],
        out_specs=pl.BlockSpec((None, BB, out_dim), lambda i: (i, 0, 0)),
        compiler_params=pltpu.CompilerParams(dimension_semantics=("parallel",)),
    )(x, P, w_cf, bn_shift)
    return out.reshape(B, out_dim)


def _reference(x_nchw, conv_w, bn_gamma, bn_beta, bn_rmean, bn_rvar, bn_eps=1e-5):
    """Pure-JAX reference mirroring the PyTorch eval forward (gf=True, hf=True, vf=False)."""
    B, C, H, W = x_nchw.shape
    F = conv_w.shape[0]
    sx = H // 4
    kx = H - sx * 3
    gf = jnp.mean(x_nchw, axis=(2, 3))
    gfnorm = gf / (jnp.linalg.norm(gf, axis=-1, keepdims=True) + 1e-12)
    w2 = conv_w.reshape(F, C)
    strips = []
    for s in range(4):
        pooled = jnp.mean(x_nchw[:, :, s * sx:s * sx + kx, :], axis=(2, 3))   # (B, C)
        h = pooled @ w2.T
        h = (h - bn_rmean) * bn_gamma / jnp.sqrt(bn_rvar + bn_eps) + bn_beta
        h = jnp.maximum(h, 0.0)
        strips.append(h)
    hfeature = jnp.concatenate(strips, axis=1)
    hnorm = hfeature / (jnp.linalg.norm(hfeature, axis=-1, keepdims=True) + 1e-12)
    return jnp.concatenate([gfnorm, hnorm], axis=1)


if __name__ == "__main__":
    # Small but module-consistent shapes: backbone feature map has 1024 channels,
    # num_features=256 (module default), spatial 8x8, batch 4 (so the kernel runs
    # 2 parallel grid steps with a 2-element batch block per step).
    B, C, H, W = 4, 1024, 8, 8
    num_features = 256

    key = jax.random.PRNGKey(0)
    k_x, k_w = jax.random.split(key)

    # "backbone output" feature map (stands in for densenet121.features(input))
    x_feat = jax.random.normal(k_x, (B, C, H, W), dtype=jnp.float32)

    # localh_conv: Conv2d(1024, 256, 1, bias=False), kaiming_normal fan_out
    # fan_out = out_channels * kh * kw = 256 -> std = sqrt(2 / 256)
    conv_w = jax.random.normal(k_w, (num_features, C, 1, 1), dtype=jnp.float32) * \
        (2.0 / num_features) ** 0.5

    # hfeat_bn2d: weight=1, bias=0, fresh running stats (mean=0, var=1), eps=1e-5
    bn_gamma = jnp.ones((num_features,), jnp.float32)
    bn_beta = jnp.zeros((num_features,), jnp.float32)
    bn_rmean = jnp.zeros((num_features,), jnp.float32)
    bn_rvar = jnp.ones((num_features,), jnp.float32)

    ref = _reference(x_feat, conv_w, bn_gamma, bn_beta, bn_rmean, bn_rvar)

    # f32 path: tight tolerance vs. the pure-JAX reference.
    out = densenet121_4_head(x_feat, conv_w, bn_gamma, bn_beta, bn_rmean, bn_rvar,
                             compute_dtype=jnp.float32)
    out = jax.block_until_ready(out)
    assert out.shape == (B, C + 4 * num_features), out.shape
    # slight slack vs 1e-5: in-kernel pooling runs on the MXU (f32 multi-pass) with a
    # different accumulation order than jnp.mean in the reference.
    assert jnp.allclose(out, ref, atol=3e-5, rtol=3e-5), \
        f"f32 max abs err {jnp.max(jnp.abs(out - ref))}"

    # bf16 compute path (v5e recommendation): halves HBM bytes, relaxed tolerance.
    out_bf16 = densenet121_4_head(x_feat, conv_w, bn_gamma, bn_beta, bn_rmean, bn_rvar,
                                  compute_dtype=jnp.bfloat16)
    out_bf16 = jax.block_until_ready(out_bf16)
    assert out_bf16.shape == (B, C + 4 * num_features), out_bf16.shape
    assert jnp.allclose(out_bf16, ref, atol=5e-3, rtol=5e-2), \
        f"bf16 max abs err {jnp.max(jnp.abs(out_bf16 - ref))}"

    print("KERNEL_OK")
</pallas_src>

<mosaic_0001>
module attributes {stable_mosaic.version = 11 : i64} {
  func.func @_head_kernel(%arg0: i32, %arg1: memref<1x128x1024xf32, #tpu.memory_space<vmem>>, %arg2: memref<10x128xf32, #tpu.memory_space<vmem>>, %arg3: memref<1024x256xf32, #tpu.memory_space<vmem>>, %arg4: memref<1x256xf32, #tpu.memory_space<vmem>>, %arg5: memref<1x2x2048xf32, #tpu.memory_space<vmem>>) attributes {dimension_semantics = [#tpu.dimension_semantics<parallel>], iteration_bounds = array<i64: 2>, scalar_prefetch = 0 : i64, scratch_operands = 0 : i64, tpu.core_type = #tpu.core_type<tc>, window_params = [{transform_indices = @transform_0, window_bounds = array<i64: 1, 128, 1024>}, {pipeline_mode = #tpu.pipeline_mode<synchronous>, transform_indices = @transform_1, window_bounds = array<i64: 10, 128>}, {pipeline_mode = #tpu.pipeline_mode<synchronous>, transform_indices = @transform_2, window_bounds = array<i64: 1024, 256>}, {pipeline_mode = #tpu.pipeline_mode<synchronous>, transform_indices = @transform_3, window_bounds = array<i64: 1, 256>}, {transform_indices = @transform_4, window_bounds = array<i64: 1, 2, 2048>}]} {
    %c0 = arith.constant 0 : index
    %c0_0 = arith.constant 0 : index
    %0 = vector.load %arg2[%c0, %c0_0] : memref<10x128xf32, #tpu.memory_space<vmem>>, vector<10x128xf32>
    %c0_1 = arith.constant 0 : index
    %c0_2 = arith.constant 0 : index
    %c0_3 = arith.constant 0 : index
    %1 = vector.load %arg1[%c0_1, %c0_2, %c0_3] : memref<1x128x1024xf32, #tpu.memory_space<vmem>>, vector<1x128x1024xf32>
    %2 = vector.shape_cast %1 : vector<1x128x1024xf32> to vector<128x1024xf32>
    %cst = arith.constant dense<0.000000e+00> : vector<10x1024xf32>
    %3 = tpu.matmul %0, %2, %cst {dimension_numbers = #tpu.dot_dimension_numbers<[1], [0], [0], [1], [0, 0, 1, 1], [], []>} : vector<10x128xf32>, vector<128x1024xf32>, vector<10x1024xf32> -> vector<10x1024xf32>
    %4 = vector.extract_strided_slice %3 {offsets = [0, 0], sizes = [8, 1024], strides = [1, 1]} : vector<10x1024xf32> to vector<8x1024xf32>
    %5 = vector.extract_strided_slice %3 {offsets = [8, 0], sizes = [2, 1024], strides = [1, 1]} : vector<10x1024xf32> to vector<2x1024xf32>
    %6 = arith.mulf %5, %5 : vector<2x1024xf32>
    %cst_4 = arith.constant dense<0.000000e+00> : vector<2xf32>
    %7 = vector.multi_reduction <add>, %6, %cst_4 [1] : vector<2x1024xf32> to vector<2xf32>
    %8 = vector.shape_cast %7 : vector<2xf32> to vector<2x1xf32>
    %cst_5 = arith.constant 1.000000e-24 : f32
    %9 = vector.broadcast %cst_5 : f32 to vector<2x1xf32>
    %10 = arith.maximumf %8, %9 : vector<2x1xf32>
    %11 = math.rsqrt %10 : vector<2x1xf32>
    %12 = vector.broadcast %11 : vector<2x1xf32> to vector<2x1024xf32>
    %13 = arith.mulf %5, %12 : vector<2x1024xf32>
    %c0_6 = arith.constant 0 : index
    %c0_7 = arith.constant 0 : index
    %c0_8 = arith.constant 0 : index
    %14 = vector.load %arg5[%c0_6, %c0_7, %c0_8] : memref<1x2x2048xf32, #tpu.memory_space<vmem>>, vector<1x2x1024xf32>
    %15 = vector.shape_cast %14 : vector<1x2x1024xf32> to vector<2x1024xf32>
    %16 = vector.shape_cast %13 : vector<2x1024xf32> to vector<1x2x1024xf32>
    tpu.vector_store %arg5[%c0_6, %c0_7, %c0_8], %16 {strides = array<i32>} : memref<1x2x2048xf32, #tpu.memory_space<vmem>>, vector<1x2x1024xf32>,
    %c0_9 = arith.constant 0 : index
    %c0_10 = arith.constant 0 : index
    %17 = vector.load %arg3[%c0_9, %c0_10] : memref<1024x256xf32, #tpu.memory_space<vmem>>, vector<1024x256xf32>
    %cst_11 = arith.constant dense<0.000000e+00> : vector<8x256xf32>
    %18 = tpu.matmul %4, %17, %cst_11 {dimension_numbers = #tpu.dot_dimension_numbers<[1], [0], [0], [1], [0, 0, 1, 1], [], []>} : vector<8x1024xf32>, vector<1024x256xf32>, vector<8x256xf32> -> vector<8x256xf32>
    %c0_12 = arith.constant 0 : index
    %c0_13 = arith.constant 0 : index
    %19 = vector.load %arg4[%c0_12, %c0_13] : memref<1x256xf32, #tpu.memory_space<vmem>>, vector<1x256xf32>
    %20 = vector.broadcast %19 : vector<1x256xf32> to vector<8x256xf32>
    %21 = arith.addf %18, %20 : vector<8x256xf32>
    %cst_14 = arith.constant 0.000000e+00 : f32
    %22 = vector.broadcast %cst_14 : f32 to vector<8x256xf32>
    %23 = arith.maximumf %21, %22 : vector<8x256xf32>
    %24 = arith.mulf %23, %23 : vector<8x256xf32>
    %cst_15 = arith.constant dense<0.000000e+00> : vector<8xf32>
    %25 = vector.multi_reduction <add>, %24, %cst_15 [1] : vector<8x256xf32> to vector<8xf32>
    %26 = vector.shape_cast %25 : vector<8xf32> to vector<8x1xf32>
    %27 = vector.extract_strided_slice %26 {offsets = [0, 0], sizes = [2, 1], strides = [1, 1]} : vector<8x1xf32> to vector<2x1xf32>
    %28 = vector.extract_strided_slice %26 {offsets = [2, 0], sizes = [2, 1], strides = [1, 1]} : vector<8x1xf32> to vector<2x1xf32>
    %29 = arith.addf %27, %28 : vector<2x1xf32>
    %30 = vector.extract_strided_slice %26 {offsets = [4, 0], sizes = [2, 1], strides = [1, 1]} : vector<8x1xf32> to vector<2x1xf32>
    %31 = arith.addf %29, %30 : vector<2x1xf32>
    %32 = vector.extract_strided_slice %26 {offsets = [6, 0], sizes = [2, 1], strides = [1, 1]} : vector<8x1xf32> to vector<2x1xf32>
    %33 = arith.addf %31, %32 : vector<2x1xf32>
    %cst_16 = arith.constant 1.000000e-24 : f32
    %34 = vector.broadcast %cst_16 : f32 to vector<2x1xf32>
    %35 = arith.maximumf %33, %34 : vector<2x1xf32>
    %36 = math.rsqrt %35 : vector<2x1xf32>
    %37 = vector.extract_strided_slice %23 {offsets = [0, 0], sizes = [2, 256], strides = [1, 1]} : vector<8x256xf32> to vector<2x256xf32>
    %38 = vector.broadcast %36 : vector<2x1xf32> to vector<2x256xf32>
    %39 = arith.mulf %37, %38 : vector<2x256xf32>
    %c0_17 = arith.constant 0 : index
    %c0_18 = arith.constant 0 : index
    %c1024 = arith.constant 1024 : index
    %40 = vector.load %arg5[%c0_17, %c0_18, %c1024] : memref<1x2x2048xf32, #tpu.memory_space<vmem>>, vector<1x2x256xf32>
    %41 = vector.shape_cast %40 : vector<1x2x256xf32> to vector<2x256xf32>
    %42 = vector.shape_cast %39 : vector<2x256xf32> to vector<1x2x256xf32>
    tpu.vector_store %arg5[%c0_17, %c0_18, %c1024], %42 {strides = array<i32>} : memref<1x2x2048xf32, #tpu.memory_space<vmem>>, vector<1x2x256xf32>,
    %43 = vector.extract_strided_slice %23 {offsets = [2, 0], sizes = [2, 256], strides = [1, 1]} : vector<8x256xf32> to vector<2x256xf32>
    %44 = vector.broadcast %36 : vector<2x1xf32> to vector<2x256xf32>
    %45 = arith.mulf %43, %44 : vector<2x256xf32>
    %c0_19 = arith.constant 0 : index
    %c0_20 = arith.constant 0 : index
    %c1280 = arith.constant 1280 : index
    %46 = vector.load %arg5[%c0_19, %c0_20, %c1280] : memref<1x2x2048xf32, #tpu.memory_space<vmem>>, vector<1x2x256xf32>
    %47 = vector.shape_cast %46 : vector<1x2x256xf32> to vector<2x256xf32>
    %48 = vector.shape_cast %45 : vector<2x256xf32> to vector<1x2x256xf32>
    tpu.vector_store %arg5[%c0_19, %c0_20, %c1280], %48 {strides = array<i32>} : memref<1x2x2048xf32, #tpu.memory_space<vmem>>, vector<1x2x256xf32>,
    %49 = vector.extract_strided_slice %23 {offsets = [4, 0], sizes = [2, 256], strides = [1, 1]} : vector<8x256xf32> to vector<2x256xf32>
    %50 = vector.broadcast %36 : vector<2x1xf32> to vector<2x256xf32>
    %51 = arith.mulf %49, %50 : vector<2x256xf32>
    %c0_21 = arith.constant 0 : index
    %c0_22 = arith.constant 0 : index
    %c1536 = arith.constant 1536 : index
    %52 = vector.load %arg5[%c0_21, %c0_22, %c1536] : memref<1x2x2048xf32, #tpu.memory_space<vmem>>, vector<1x2x256xf32>
    %53 = vector.shape_cast %52 : vector<1x2x256xf32> to vector<2x256xf32>
    %54 = vector.shape_cast %51 : vector<2x256xf32> to vector<1x2x256xf32>
    tpu.vector_store %arg5[%c0_21, %c0_22, %c1536], %54 {strides = array<i32>} : memref<1x2x2048xf32, #tpu.memory_space<vmem>>, vector<1x2x256xf32>,
    %55 = vector.extract_strided_slice %23 {offsets = [6, 0], sizes = [2, 256], strides = [1, 1]} : vector<8x256xf32> to vector<2x256xf32>
    %56 = vector.broadcast %36 : vector<2x1xf32> to vector<2x256xf32>
    %57 = arith.mulf %55, %56 : vector<2x256xf32>
    %c0_23 = arith.constant 0 : index
    %c0_24 = arith.constant 0 : index
    %c1792 = arith.constant 1792 : index
    %58 = vector.load %arg5[%c0_23, %c0_24, %c1792] : memref<1x2x2048xf32, #tpu.memory_space<vmem>>, vector<1x2x256xf32>
    %59 = vector.shape_cast %58 : vector<1x2x256xf32> to vector<2x256xf32>
    %60 = vector.shape_cast %57 : vector<2x256xf32> to vector<1x2x256xf32>
    tpu.vector_store %arg5[%c0_23, %c0_24, %c1792], %60 {strides = array<i32>} : memref<1x2x2048xf32, #tpu.memory_space<vmem>>, vector<1x2x256xf32>,
    return
  }
  func.func @transform_0(%arg0: i32) -> (i32, i32, i32) {
    %c0_i32 = arith.constant 0 : i32
    %c0_i32_0 = arith.constant 0 : i32
    %c0_i32_1 = arith.constant 0 : i32
    return %arg0, %c0_i32, %c0_i32_0 : i32, i32, i32
  }
  func.func @transform_1(%arg0: i32) -> (i32, i32) {
    %c0_i32 = arith.constant 0 : i32
    %c0_i32_0 = arith.constant 0 : i32
    %c0_i32_1 = arith.constant 0 : i32
    return %c0_i32, %c0_i32_0 : i32, i32
  }
  func.func @transform_2(%arg0: i32) -> (i32, i32) {
    %c0_i32 = arith.constant 0 : i32
    %c0_i32_0 = arith.constant 0 : i32
    %c0_i32_1 = arith.constant 0 : i32
    return %c0_i32, %c0_i32_0 : i32, i32
  }
  func.func @transform_3(%arg0: i32) -> (i32, i32) {
    %c0_i32 = arith.constant 0 : i32
    %c0_i32_0 = arith.constant 0 : i32
    %c0_i32_1 = arith.constant 0 : i32
    return %c0_i32, %c0_i32_0 : i32, i32
  }
  func.func @transform_4(%arg0: i32) -> (i32, i32, i32) {
    %c0_i32 = arith.constant 0 : i32
    %c0_i32_0 = arith.constant 0 : i32
    %c0_i32_1 = arith.constant 0 : i32
    return %arg0, %c0_i32, %c0_i32_0 : i32, i32, i32
  }
}

</mosaic_0001>

<llo_original>
// kernel: tpu_custom_call.1
$region0: #{tpu_custom_call.1}
  #allocation0 [shape = 'u32[]', space=smem, size = 0x4, offset = 0x4, fixed_abs, tag = 'smem constant byte address 0x4 - core index']
  #allocation1 [shape = 'u32[144,128]{1,0:T(1,128)}', space=vmem, size = 0x12000, scoped, tag = 'internal scratch']
  %s0 = inlined_call_operand.hbm [shape: f32[2,128,1024], index: 0, kind: input, shape index: {}]
  %s1 = inlined_call_operand.hbm [shape: f32[10,128], index: 1, kind: input, shape index: {}]
  %s2 = inlined_call_operand.hbm [shape: f32[1024,256], index: 2, kind: input, shape index: {}]
  %s3 = inlined_call_operand.vmem [shape: f32[1,256], index: 3, kind: input, shape index: {}]
  %s4 = inlined_call_operand.hbm [shape: f32[2,2,2048], index: 4, kind: output, shape index: {}]
  %s5 = sld [smem:[#allocation0]]
  $region61: #{tpu_custom_call.1} parent=0
    _
  %s7 = ssub.s32 1, %s5
  %s8 = scalar_select 0, %s7, %s5
  $region1: #{tpu_custom_call.1} parent=0
    #allocation2 [shape = 'u8[1048576]{0}', space=vmem, size = 0x100000, scoped, tag = 'input window, operand 0']
    #allocation3 [shape = 's32[2]{0}', space=sflag, size = 0x8, scoped, tag = 'scoped memory for tpu_custom_call.1']
    #allocation4 [shape = 's32[2]{0}', space=sflag, size = 0x8, scoped, tag = 'scoped memory for tpu_custom_call.1']
    #allocation5 [shape = 'u8[8192]{0}', space=vmem, size = 0x2000, scoped, tag = 'input window, operand 1, single buffered']
    #allocation6 [shape = 's32[1]{0}', space=sflag, size = 0x4, scoped, tag = 'scoped memory for tpu_custom_call.1']
    #allocation7 [shape = 'u8[1048576]{0}', space=vmem, size = 0x100000, scoped, tag = 'input window, operand 2, single buffered']
    #allocation8 [shape = 'u8[32768]{0}', space=vmem, size = 0x8000, scoped, tag = 'output window, operand 0']
    %9 = vsyncpa [#allocation3], 0
    %s10 = scalar_lea.sflag [#allocation3], 1
    %11 = vsyncpa %s10, 0
    %12 = vsyncpa [#allocation6], 0
    %13 = vsyncpa [#allocation4], 0
    %s14 = scalar_lea.sflag [#allocation4], 1
    %15 = vsyncpa %s14, 0
    loop: start=0, step=1, limit=4
    $region2: #{tpu_custom_call.1} parent=1 // loop_pre_header
      _
    $region3: #{tpu_custom_call.1} parent=1 // loop_header
      %s17 = sphi 0, %s21
      %p18 = scmp.ge.s32.totalorder %s17, 4
      %s27 = sphi 0, %s29
      %s30 = sphi 0, %s27
      %s31 = sphi 0, %s30
      %s47 = sphi 0, %s31
      %s51 = sphi 0, %s51
      %s53 = sphi 0, %s51
      %s54 = sphi 0, %s53
      %s68 = sphi 0, %s54
      %s72 = sphi 0, %s72
      %s74 = sphi 0, %s72
      %s75 = sphi 0, %s74
      %s89 = sphi 0, %s75
      %s93 = sphi 0, %s93
      %s95 = sphi 0, %s93
      %s96 = sphi 0, %s95
      %s110 = sphi 0, %s96
      %s116 = sphi 0, %s118
      %s119 = sphi 0, %s116
      %s120 = sphi 0, %s119
      %s136 = sphi 0, %s120
    $region4: #{tpu_custom_call.1} parent=1 // loop_header_branch
      %20 = sbr.rel (%p18) target = $region8
    $region5: #{tpu_custom_call.1} parent=1 // loop_body
      %s22 = ssub.s32 %s17, 1
      %s23 = ssub.s32 %s17, 2
      %s24 = sadd.s32 %s17, 1
      %s25 = ssub.s32 %s17, %s24
      %p26 = scmp.eq.s32.totalorder %s25, 0
      %s28 = sadd.s32 %s27, 1
      %s29 = scalar_select %p26, %s27, %s28
      %p32 = pneg %p26
      %p33 = scmp.eq.s32.totalorder %s17, 1
      %p34 = por %p32, %p33
      %p35 = scmp.ne.s32.totalorder %s27, %s30
      %p36 = scmp.eq.s32.totalorder %s17, 0
      %p37 = por %p35, %p36
      %p38 = scmp.ne.s32.totalorder %s27, %s30
      %p39 = scmp.eq.s32.totalorder %s22, 1
      %p40 = por %p38, %p39
      %p41 = scmp.ne.s32.totalorder %s30, %s31
      %p42 = scmp.eq.s32.totalorder %s22, 0
      %p43 = por %p41, %p42
      %p44 = scmp.ne.s32.totalorder %s30, %s31
      %p45 = scmp.eq.s32.totalorder %s23, 1
      %p46 = por %p44, %p45
      %p48 = scmp.ne.s32.totalorder %s31, %s47
      %p49 = scmp.eq.s32.totalorder %s23, 0
      %p50 = por %p48, %p49
      %s52 = sadd.s32 %s51, 1
      %p55 = scmp.eq.s32.totalorder %s17, 1
      %p56 = scmp.ne.s32.totalorder %s51, %s53
      %p57 = scmp.eq.s32.totalorder %s17, 0
      %p58 = por %p56, %p57
      %p59 = scmp.ne.s32.totalorder %s51, %s53
      %p60 = scmp.eq.s32.totalorder %s22, 1
      %p61 = por %p59, %p60
      %p62 = scmp.ne.s32.totalorder %s53, %s54
      %p63 = scmp.eq.s32.totalorder %s22, 0
      %p64 = por %p62, %p63
      %p65 = scmp.ne.s32.totalorder %s53, %s54
      %p66 = scmp.eq.s32.totalorder %s23, 1
      %p67 = por %p65, %p66
      %p69 = scmp.ne.s32.totalorder %s54, %s68
      %p70 = scmp.eq.s32.totalorder %s23, 0
      %p71 = por %p69, %p70
      %s73 = sadd.s32 %s72, 1
      %p76 = scmp.eq.s32.totalorder %s17, 1
      %p77 = scmp.ne.s32.totalorder %s72, %s74
      %p78 = scmp.eq.s32.totalorder %s17, 0
      %p79 = por %p77, %p78
      %p80 = scmp.ne.s32.totalorder %s72, %s74
      %p81 = scmp.eq.s32.totalorder %s22, 1
      %p82 = por %p80, %p81
      %p83 = scmp.ne.s32.totalorder %s74, %s75
      %p84 = scmp.eq.s32.totalorder %s22, 0
      %p85 = por %p83, %p84
      %p86 = scmp.ne.s32.totalorder %s74, %s75
      %p87 = scmp.eq.s32.totalorder %s23, 1
      %p88 = por %p86, %p87
      %p90 = scmp.ne.s32.totalorder %s75, %s89
      %p91 = scmp.eq.s32.totalorder %s23, 0
      %p92 = por %p90, %p91
      %s94 = sadd.s32 %s93, 1
      %p97 = scmp.eq.s32.totalorder %s17, 1
      %p98 = scmp.ne.s32.totalorder %s93, %s95
      %p99 = scmp.eq.s32.totalorder %s17, 0
      %p100 = por %p98, %p99
      %p101 = scmp.ne.s32.totalorder %s93, %s95
      %p102 = scmp.eq.s32.totalorder %s22, 1
      %p103 = por %p101, %p102
      %p104 = scmp.ne.s32.totalorder %s95, %s96
      %p105 = scmp.eq.s32.totalorder %s22, 0
      %p106 = por %p104, %p105
      %p107 = scmp.ne.s32.totalorder %s95, %s96
      %p108 = scmp.eq.s32.totalorder %s23, 1
      %p109 = por %p107, %p108
      %p111 = scmp.ne.s32.totalorder %s96, %s110
      %p112 = scmp.eq.s32.totalorder %s23, 0
      %p113 = por %p111, %p112
      %s114 = ssub.s32 %s17, %s24
      %p115 = scmp.eq.s32.totalorder %s114, 0
      %s117 = sadd.s32 %s116, 1
      %s118 = scalar_select %p115, %s116, %s117
      %p121 = pneg %p115
      %p122 = scmp.eq.s32.totalorder %s17, 1
      %p123 = por %p121, %p122
      %p124 = scmp.ne.s32.totalorder %s116, %s119
      %p125 = scmp.eq.s32.totalorder %s17, 0
      %p126 = por %p124, %p125
      %p127 = scmp.ne.s32.totalorder %s116, %s119
      %p128 = scmp.eq.s32.totalorder %s22, 1
      %p129 = por %p127, %p128
      %p130 = scmp.ne.s32.totalorder %s119, %s120
      %p131 = scmp.eq.s32.totalorder %s22, 0
      %p132 = por %p130, %p131
      %p133 = scmp.ne.s32.totalorder %s119, %s120
      %p134 = scmp.eq.s32.totalorder %s23, 1
      %p135 = por %p133, %p134
      %p137 = scmp.ne.s32.totalorder %s120, %s136
      %p138 = scmp.eq.s32.totalorder %s23, 0
      %p139 = por %p137, %p138
      %p140 = scmp.le.s32.totalorder 1, %s17
      %p141 = scmp.lt.s32.totalorder %s17, 3
      %p142 = pnand %p140, %p141
      %p143 = pneg %p142
      // Predicated region
      $region9: #{tpu_custom_call.1} parent=5 // pred_check
        _
      $region10: #{tpu_custom_call.1} parent=5 // pred_check_branch
        %145 = sbr.rel (%p142) target = $region12
      $region11: #{tpu_custom_call.1} parent=5 // pred_region
        %s146 = ssub.s32 %s17, 1
        // Predicated region
        $region13: #{tpu_custom_call.1} parent=11 // pred_check
          %p147 = pneg %p64
        $region14: #{tpu_custom_call.1} parent=11 // pred_check_branch
          %149 = sbr.rel (%p147) target = $region16
        $region15: #{tpu_custom_call.1} parent=11 // pred_region
          %s151 = ssub.s32 256, 256
          %152 = vsyncadd [#allocation6], %s151
          %s153 = sshll.u32 [#allocation5], 4
          %s154 = int_to_ptr.vmem [resolvable:$true] %s153
          %159 = dma.hbm_to_vmem [thread:$0]  %s1, 256, %s154, [#allocation6], 128, 128, 8
        $region16: #{tpu_custom_call.1} parent=11 // pred_fallthru
          _
        // Predicated region
        $region17: #{tpu_custom_call.1} parent=11 // pred_check
          %p160 = pneg %p85
        $region18: #{tpu_custom_call.1} parent=11 // pred_check_branch
          %162 = sbr.rel (%p160) target = $region20
        $region19: #{tpu_custom_call.1} parent=11 // pred_region
          %s164 = ssub.s32 32768, 32768
          %165 = vsyncadd [#allocation6], %s164
          %s166 = sshll.u32 [#allocation7], 4
          %s167 = int_to_ptr.vmem [resolvable:$true] %s166
          %172 = dma.hbm_to_vmem [thread:$0]  %s2, 32768, %s167, [#allocation6], 256, 256, 16
        $region20: #{tpu_custom_call.1} parent=11 // pred_fallthru
          _
        // Predicated region
        $region21: #{tpu_custom_call.1} parent=11 // pred_check
          %p173 = pneg %p106
        $region22: #{tpu_custom_call.1} parent=11 // pred_check_branch
          %175 = sbr.rel (%p173) target = $region24
        $region23: #{tpu_custom_call.1} parent=11 // pred_region
          _
        $region24: #{tpu_custom_call.1} parent=11 // pred_fallthru
          _
      $region12: #{tpu_custom_call.1} parent=5 // pred_fallthru
        _
      %p176 = scmp.lt.s32.totalorder %s17, 2
      // Predicated region
      $region25: #{tpu_custom_call.1} parent=5 // pred_check
        %p177 = pneg %p176
      $region26: #{tpu_custom_call.1} parent=5 // pred_check_branch
        %179 = sbr.rel (%p177) target = $region28
      $region27: #{tpu_custom_call.1} parent=5 // pred_region
        // Predicated region
        $region29: #{tpu_custom_call.1} parent=27 // pred_check
          %p180 = pneg %p37
        $region30: #{tpu_custom_call.1} parent=27 // pred_check_branch
          %182 = sbr.rel (%p180) target = $region32
        $region31: #{tpu_custom_call.1} parent=27 // pred_region
          %s183 = sand.u32 %s27, 1
          %s184 = scalar_lea.sflag [#allocation3], %s183
          %s185 = sand.u32 %s27, 1
          %s186 = smul.addr %s185, 1024
          %s187 = scalar_lea.vmem [#allocation2], %s186
          %s189 = ssub.s32 16384, 16384
          %190 = vsyncadd %s184, %s189
          %s191 = smul.addr %s17, 128
          %s192 = smul.addr %s191, 128
          %s193 = scalar_lea.hbm %s0, %s192
          %s194 = sshll.u32 %s187, 4
          %s195 = int_to_ptr.vmem [resolvable:$true] %s194
          %200 = dma.hbm_to_vmem [thread:$0]  %s193, 16384, %s195, %s184, 1024, 1024, 64
        $region32: #{tpu_custom_call.1} parent=27 // pred_fallthru
          _
      $region28: #{tpu_custom_call.1} parent=5 // pred_fallthru
        _
      %p201 = scmp.le.s32.totalorder 1, %s17
      %p202 = scmp.lt.s32.totalorder %s17, 3
      %p203 = pnand %p201, %p202
      %p204 = pneg %p203
      // Predicated region
      $region33: #{tpu_custom_call.1} parent=5 // pred_check
        _
      $region34: #{tpu_custom_call.1} parent=5 // pred_check_branch
        %206 = sbr.rel (%p203) target = $region36
      $region35: #{tpu_custom_call.1} parent=5 // pred_region
        %s207 = ssub.s32 %s17, 1
        %s208 = sand.u32 %s30, 1
        %s209 = scalar_lea.sflag [#allocation3], %s208
        %s210 = sand.u32 %s30, 1
        %s211 = smul.addr %s210, 1024
        %s212 = scalar_lea.vmem [#allocation2], %s211
        // Predicated region
        $region37: #{tpu_custom_call.1} parent=35 // pred_check
          %p213 = pneg %p43
        $region38: #{tpu_custom_call.1} parent=35 // pred_check_branch
          %215 = sbr.rel (%p213) target = $region40
        $region39: #{tpu_custom_call.1} parent=35 // pred_region
          %216 = dma.done %s209, 16384
        $region40: #{tpu_custom_call.1} parent=35 // pred_fallthru
          _
        // Predicated region
        $region41: #{tpu_custom_call.1} parent=35 // pred_check
          %p217 = pneg %p64
        $region42: #{tpu_custom_call.1} parent=35 // pred_check_branch
          %219 = sbr.rel (%p217) target = $region44
        $region43: #{tpu_custom_call.1} parent=35 // pred_region
          %220 = dma.done [#allocation6], 256
        $region44: #{tpu_custom_call.1} parent=35 // pred_fallthru
          _
        // Predicated region
        $region45: #{tpu_custom_call.1} parent=35 // pred_check
          %p221 = pneg %p85
        $region46: #{tpu_custom_call.1} parent=35 // pred_check_branch
          %223 = sbr.rel (%p221) target = $region48
        $region47: #{tpu_custom_call.1} parent=35 // pred_region
          %224 = dma.done [#allocation6], 32768
        $region48: #{tpu_custom_call.1} parent=35 // pred_fallthru
          _
        %s225 = sand.u32 %s30, 1
        %s226 = scalar_lea.sflag [#allocation3], %s225
        %s227 = sand.u32 %s30, 1
        %s228 = smul.addr %s227, 1024
        %s229 = scalar_lea.vmem [#allocation2], %s228
        %p230 = pneg %p43
        %p231 = pneg %p40
        %p232 = pneg %p64
        %p233 = pneg %p61
        %p234 = pneg %p85
        %p235 = pneg %p82
        %p236 = pneg %p106
        %p237 = pneg %p103
        %p238 = pneg %p132
        %p239 = pneg %p129
        %s240 = sand.u32 %s119, 1
        %s241 = scalar_lea.sflag [#allocation4], %s240
        %s242 = sand.u32 %s119, 1
        %s243 = smul.addr %s242, 32
        %s244 = scalar_lea.vmem [#allocation8], %s243
        %v245 = vld [vmem:[#allocation5] sm:$0xff]
        %v246 = vld [vmem:[#allocation5 + $0x8] sm:$0x3]
        %v247 = vld [vmem:[%s212] sm:$0xff]
        %v248 = vld [vmem:[%s212 + $0x8] sm:$0xff]
        %v249 = vld [vmem:[%s212 + $0x10] sm:$0xff]
        %v250 = vld [vmem:[%s212 + $0x18] sm:$0xff]
        %v251 = vld [vmem:[%s212 + $0x20] sm:$0xff]
        %v252 = vld [vmem:[%s212 + $0x28] sm:$0xff]
        %v253 = vld [vmem:[%s212 + $0x30] sm:$0xff]
        %v254 = vld [vmem:[%s212 + $0x38] sm:$0xff]
        %v255 = vld [vmem:[%s212 + $0x40] sm:$0xff]
        %v256 = vld [vmem:[%s212 + $0x48] sm:$0xff]
        %v257 = vld [vmem:[%s212 + $0x50] sm:$0xff]
        %v258 = vld [vmem:[%s212 + $0x58] sm:$0xff]
        %v259 = vld [vmem:[%s212 + $0x60] sm:$0xff]
        %v260 = vld [vmem:[%s212 + $0x68] sm:$0xff]
        %v261 = vld [vmem:[%s212 + $0x70] sm:$0xff]
        %v262 = vld [vmem:[%s212 + $0x78] sm:$0xff]
        %v263 = vld [vmem:[%s212 + $0x80] sm:$0xff]
        %v264 = vld [vmem:[%s212 + $0x88] sm:$0xff]
        %v265 = vld [vmem:[%s212 + $0x90] sm:$0xff]
        %v266 = vld [vmem:[%s212 + $0x98] sm:$0xff]
        %v267 = vld [vmem:[%s212 + $0xa0] sm:$0xff]
        %v268 = vld [vmem:[%s212 + $0xa8] sm:$0xff]
        %v269 = vld [vmem:[%s212 + $0xb0] sm:$0xff]
        %v270 = vld [vmem:[%s212 + $0xb8] sm:$0xff]
        %v271 = vld [vmem:[%s212 + $0xc0] sm:$0xff]
        %v272 = vld [vmem:[%s212 + $0xc8] sm:$0xff]
        %v273 = vld [vmem:[%s212 + $0xd0] sm:$0xff]
        %v274 = vld [vmem:[%s212 + $0xd8] sm:$0xff]
        %v275 = vld [vmem:[%s212 + $0xe0] sm:$0xff]
        %v276 = vld [vmem:[%s212 + $0xe8] sm:$0xff]
        %v277 = vld [vmem:[%s212 + $0xf0] sm:$0xff]
        %v278 = vld [vmem:[%s212 + $0xf8] sm:$0xff]
        %v279 = vld [vmem:[%s212 + $0x100] sm:$0xff]
        %v280 = vld [vmem:[%s212 + $0x108] sm:$0xff]
        %v281 = vld [vmem:[%s212 + $0x110] sm:$0xff]
        %v282 = vld [vmem:[%s212 + $0x118] sm:$0xff]
        %v283 = vld [vmem:[%s212 + $0x120] sm:$0xff]
        %v284 = vld [vmem:[%s212 + $0x128] sm:$0xff]
        %v285 = vld [vmem:[%s212 + $0x130] sm:$0xff]
        %v286 = vld [vmem:[%s212 + $0x138] sm:$0xff]
        %v287 = vld [vmem:[%s212 + $0x140] sm:$0xff]
        %v288 = vld [vmem:[%s212 + $0x148] sm:$0xff]
        %v289 = vld [vmem:[%s212 + $0x150] sm:$0xff]
        %v290 = vld [vmem:[%s212 + $0x158] sm:$0xff]
        %v291 = vld [vmem:[%s212 + $0x160] sm:$0xff]
        %v292 = vld [vmem:[%s212 + $0x168] sm:$0xff]
        %v293 = vld [vmem:[%s212 + $0x170] sm:$0xff]
        %v294 = vld [vmem:[%s212 + $0x178] sm:$0xff]
        %v295 = vld [vmem:[%s212 + $0x180] sm:$0xff]
        %v296 = vld [vmem:[%s212 + $0x188] sm:$0xff]
        %v297 = vld [vmem:[%s212 + $0x190] sm:$0xff]
        %v298 = vld [vmem:[%s212 + $0x198] sm:$0xff]
        %v299 = vld [vmem:[%s212 + $0x1a0] sm:$0xff]
        %v300 = vld [vmem:[%s212 + $0x1a8] sm:$0xff]
        %v301 = vld [vmem:[%s212 + $0x1b0] sm:$0xff]
        %v302 = vld [vmem:[%s212 + $0x1b8] sm:$0xff]
        %v303 = vld [vmem:[%s212 + $0x1c0] sm:$0xff]
        %v304 = vld [vmem:[%s212 + $0x1c8] sm:$0xff]
        %v305 = vld [vmem:[%s212 + $0x1d0] sm:$0xff]
        %v306 = vld [vmem:[%s212 + $0x1d8] sm:$0xff]
        %v307 = vld [vmem:[%s212 + $0x1e0] sm:$0xff]
        %v308 = vld [vmem:[%s212 + $0x1e8] sm:$0xff]
        %v309 = vld [vmem:[%s212 + $0x1f0] sm:$0xff]
        %v310 = vld [vmem:[%s212 + $0x1f8] sm:$0xff]
        %v311 = vld [vmem:[%s212 + $0x200] sm:$0xff]
        %v312 = vld [vmem:[%s212 + $0x208] sm:$0xff]
        %v313 = vld [vmem:[%s212 + $0x210] sm:$0xff]
        %v314 = vld [vmem:[%s212 + $0x218] sm:$0xff]
        %v315 = vld [vmem:[%s212 + $0x220] sm:$0xff]
        %v316 = vld [vmem:[%s212 + $0x228] sm:$0xff]
        %v317 = vld [vmem:[%s212 + $0x230] sm:$0xff]
        %v318 = vld [vmem:[%s212 + $0x238] sm:$0xff]
        %v319 = vld [vmem:[%s212 + $0x240] sm:$0xff]
        %v320 = vld [vmem:[%s212 + $0x248] sm:$0xff]
        %v321 = vld [vmem:[%s212 + $0x250] sm:$0xff]
        %v322 = vld [vmem:[%s212 + $0x258] sm:$0xff]
        %v323 = vld [vmem:[%s212 + $0x260] sm:$0xff]
        %v324 = vld [vmem:[%s212 + $0x268] sm:$0xff]
        %v325 = vld [vmem:[%s212 + $0x270] sm:$0xff]
        %v326 = vld [vmem:[%s212 + $0x278] sm:$0xff]
        %v327 = vld [vmem:[%s212 + $0x280] sm:$0xff]
        %v328 = vld [vmem:[%s212 + $0x288] sm:$0xff]
        %v329 = vld [vmem:[%s212 + $0x290] sm:$0xff]
        %v330 = vld [vmem:[%s212 + $0x298] sm:$0xff]
        %v331 = vld [vmem:[%s212 + $0x2a0] sm:$0xff]
        %v332 = vld [vmem:[%s212 + $0x2a8] sm:$0xff]
        %v333 = vld [vmem:[%s212 + $0x2b0] sm:$0xff]
        %v334 = vld [vmem:[%s212 + $0x2b8] sm:$0xff]
        %v335 = vld [vmem:[%s212 + $0x2c0] sm:$0xff]
        %v336 = vld [vmem:[%s212 + $0x2c8] sm:$0xff]
        %v337 = vld [vmem:[%s212 + $0x2d0] sm:$0xff]
        %v338 = vld [vmem:[%s212 + $0x2d8] sm:$0xff]
        %v339 = vld [vmem:[%s212 + $0x2e0] sm:$0xff]
        %v340 = vld [vmem:[%s212 + $0x2e8] sm:$0xff]
        %v341 = vld [vmem:[%s212 + $0x2f0] sm:$0xff]
        %v342 = vld [vmem:[%s212 + $0x2f8] sm:$0xff]
        %v343 = vld [vmem:[%s212 + $0x300] sm:$0xff]
        %v344 = vld [vmem:[%s212 + $0x308] sm:$0xff]
        %v345 = vld [vmem:[%s212 + $0x310] sm:$0xff]
        %v346 = vld [vmem:[%s212 + $0x318] sm:$0xff]
        %v347 = vld [vmem:[%s212 + $0x320] sm:$0xff]
        %v348 = vld [vmem:[%s212 + $0x328] sm:$0xff]
        %v349 = vld [vmem:[%s212 + $0x330] sm:$0xff]
        %v350 = vld [vmem:[%s212 + $0x338] sm:$0xff]
        %v351 = vld [vmem:[%s212 + $0x340] sm:$0xff]
        %v352 = vld [vmem:[%s212 + $0x348] sm:$0xff]
        %v353 = vld [vmem:[%s212 + $0x350] sm:$0xff]
        %v354 = vld [vmem:[%s212 + $0x358] sm:$0xff]
        %v355 = vld [vmem:[%s212 + $0x360] sm:$0xff]
        %v356 = vld [vmem:[%s212 + $0x368] sm:$0xff]
        %v357 = vld [vmem:[%s212 + $0x370] sm:$0xff]
        %v358 = vld [vmem:[%s212 + $0x378] sm:$0xff]
        %v359 = vld [vmem:[%s212 + $0x380] sm:$0xff]
        %v360 = vld [vmem:[%s212 + $0x388] sm:$0xff]
        %v361 = vld [vmem:[%s212 + $0x390] sm:$0xff]
        %v362 = vld [vmem:[%s212 + $0x398] sm:$0xff]
        %v363 = vld [vmem:[%s212 + $0x3a0] sm:$0xff]
        %v364 = vld [vmem:[%s212 + $0x3a8] sm:$0xff]
        %v365 = vld [vmem:[%s212 + $0x3b0] sm:$0xff]
        %v366 = vld [vmem:[%s212 + $0x3b8] sm:$0xff]
        %v367 = vld [vmem:[%s212 + $0x3c0] sm:$0xff]
        %v368 = vld [vmem:[%s212 + $0x3c8] sm:$0xff]
        %v369 = vld [vmem:[%s212 + $0x3d0] sm:$0xff]
        %v370 = vld [vmem:[%s212 + $0x3d8] sm:$0xff]
        %v371 = vld [vmem:[%s212 + $0x3e0] sm:$0xff]
        %v372 = vld [vmem:[%s212 + $0x3e8] sm:$0xff]
        %v373 = vld [vmem:[%s212 + $0x3f0] sm:$0xff]
        %v374 = vld [vmem:[%s212 + $0x3f8] sm:$0xff]
        %375 = vmatprep.subr.mxu0 %v368
        %376 = vmatpush1.msra.mxu0 %v367
        %377 = vmatprep.subr.mxu0 %v360
        %378 = vmatpush1.msra.mxu0 %v359
        %379 = vmatprep.subr.mxu0 %v352
        %380 = vmatpush1.msra.mxu0 %v351
        %381 = vmatprep.subr.mxu0 %v344
        %382 = vmatpush1.msra.mxu0 %v343
        %383 = vmatprep.subr.mxu0 %v336
        %384 = vmatpush1.msra.mxu0 %v335
        %385 = vmatprep.subr.mxu0 %v328
        %386 = vmatpush1.msra.mxu0 %v327
        %387 = vmatprep.subr.mxu0 %v320
        %388 = vmatpush1.msra.mxu0 %v319
        %389 = vmatprep.subr.mxu0 %v312
        %390 = vmatpush1.msra.mxu0 %v311
        %391 = vmatprep.subr.mxu0 %v304
        %392 = vmatpush1.msra.mxu0 %v303
        %393 = vmatprep.subr.mxu0 %v296
        %394 = vmatpush1.msra.mxu0 %v295
        %395 = vmatprep.subr.mxu0 %v288
        %396 = vmatpush1.msra.mxu0 %v287
        %397 = vmatprep.subr.mxu0 %v280
        %398 = vmatpush1.msra.mxu0 %v279
        %399 = vmatprep.subr.mxu0 %v272
        %400 = vmatpush1.msra.mxu0 %v271
        %401 = vmatprep.subr.mxu0 %v264
        %402 = vmatpush1.msra.mxu0 %v263
        %403 = vmatprep.subr.mxu0 %v256
        %404 = vmatpush1.msra.mxu0 %v255
        %405 = vmatprep.subr.mxu0 %v248
        %406 = vmatpush1.msra.mxu0 %v247
        %407 = vmatprep.subr.mxu0 0.0
        %408 = vmatpush2.msra.mxu0 0.0
        %409 = vmatprep.subr.mxu0 0.0
        %410 = vmatpush2.msra.mxu0 0.0
        %411 = vmatprep.subr.mxu0 0.0
        %412 = vmatpush2.msra.mxu0 0.0
        %413 = vmatprep.subr.mxu0 0.0
        %414 = vmatpush2.msra.mxu0 0.0
        %415 = vmatprep.subr.mxu0 0.0
        %416 = vmatpush2.msra.mxu0 0.0
        %417 = vmatprep.subr.mxu0 0.0
        %418 = vmatpush2.msra.mxu0 0.0
        %419 = vmatprep.subr.mxu0 0.0
        %420 = vmatpush2.msra.mxu0 0.0
        %421 = vmatprep.subr.mxu0 0.0
        %422 = vmatpush2.msra.mxu0 0.0
        %423 = vmatprep.subr.mxu0 0.0
        %424 = vmatpush2.msra.mxu0 0.0
        %425 = vmatprep.subr.mxu0 0.0
        %426 = vmatpush2.msra.mxu0 0.0
        %427 = vmatprep.subr.mxu0 0.0
        %428 = vmatpush2.msra.mxu0 0.0
        %429 = vmatprep.subr.mxu0 0.0
        %430 = vmatpush2.msra.mxu0 0.0
        %431 = vmatprep.subr.mxu0 0.0
        %432 = vmatpush2.msra.mxu0 0.0
        %433 = vmatprep.subr.mxu0 0.0
        %434 = vmatpush2.msra.mxu0 0.0
        %435 = vmatprep.subr.mxu0 0.0
        %436 = vmatpush2.msra.mxu0 0.0
        %437 = vmatprep.subr.mxu0 0.0
        %438 = vmatpush2.msra.mxu0 0.0
        %439 = vmatprep.mubr.f32.mxu0 0.0
        %440 = vmatmul.mubr.f32.gmra.mxu0 %v245
        %v441 = vpop.f32.mrf.mxu0
        %v442 = vadd.f32 0.0, %v441
        %v443 = vpop.f32.mrf.mxu0
        %v444 = vadd.f32 0.0, %v443
        %445 = vmatprep.mubr.f32.mxu0 0.0
        %446 = vmatmul.mubr.f32.gmra.mxu0 %v246
        %v447 = vpop.f32.mrf.mxu0
        %v448 = vadd.f32 0.0, %v447
        %v449 = vpop.f32.mrf.mxu0
        %v450 = vadd.f32 0.0, %v449
        %451 = vdwg.mxu0
        %452 = vmatprep.subr.mxu0 %v370
        %453 = vmatpush1.msra.mxu0 %v369
        %454 = vmatprep.subr.mxu0 %v362
        %455 = vmatpush1.msra.mxu0 %v361
        %456 = vmatprep.subr.mxu0 %v354
        %457 = vmatpush1.msra.mxu0 %v353
        %458 = vmatprep.subr.mxu0 %v346
        %459 = vmatpush1.msra.mxu0 %v345
        %460 = vmatprep.subr.mxu0 %v338
        %461 = vmatpush1.msra.mxu0 %v337
        %462 = vmatprep.subr.mxu0 %v330
        %463 = vmatpush1.msra.mxu0 %v329
        %464 = vmatprep.subr.mxu0 %v322
        %465 = vmatpush1.msra.mxu0 %v321
        %466 = vmatprep.subr.mxu0 %v314
        %467 = vmatpush1.msra.mxu0 %v313
        %468 = vmatprep.subr.mxu0 %v306
        %469 = vmatpush1.msra.mxu0 %v305
        %470 = vmatprep.subr.mxu0 %v298
        %471 = vmatpush1.msra.mxu0 %v297
        %472 = vmatprep.subr.mxu0 %v290
        %473 = vmatpush1.msra.mxu0 %v289
        %474 = vmatprep.subr.mxu0 %v282
        %475 = vmatpush1.msra.mxu0 %v281
        %476 = vmatprep.subr.mxu0 %v274
        %477 = vmatpush1.msra.mxu0 %v273
        %478 = vmatprep.subr.mxu0 %v266
        %479 = vmatpush1.msra.mxu0 %v265
        %480 = vmatprep.subr.mxu0 %v258
        %481 = vmatpush1.msra.mxu0 %v257
        %482 = vmatprep.subr.mxu0 %v250
        %483 = vmatpush1.msra.mxu0 %v249
        %484 = vmatprep.subr.mxu0 0.0
        %485 = vmatpush2.msra.mxu0 0.0
        %486 = vmatprep.subr.mxu0 0.0
        %487 = vmatpush2.msra.mxu0 0.0
        %488 = vmatprep.subr.mxu0 0.0
        %489 = vmatpush2.msra.mxu0 0.0
        %490 = vmatprep.subr.mxu0 0.0
        %491 = vmatpush2.msra.mxu0 0.0
        %492 = vmatprep.subr.mxu0 0.0
        %493 = vmatpush2.msra.mxu0 0.0
        %494 = vmatprep.subr.mxu0 0.0
        %495 = vmatpush2.msra.mxu0 0.0
        %496 = vmatprep.subr.mxu0 0.0
        %497 = vmatpush2.msra.mxu0 0.0
        %498 = vmatprep.subr.mxu0 0.0
        %499 = vmatpush2.msra.mxu0 0.0
        %500 = vmatprep.subr.mxu0 0.0
        %501 = vmatpush2.msra.mxu0 0.0
        %502 = vmatprep.subr.mxu0 0.0
        %503 = vmatpush2.msra.mxu0 0.0
        %504 = vmatprep.subr.mxu0 0.0
        %505 = vmatpush2.msra.mxu0 0.0
        %506 = vmatprep.subr.mxu0 0.0
        %507 = vmatpush2.msra.mxu0 0.0
        %508 = vmatprep.subr.mxu0 0.0
        %509 = vmatpush2.msra.mxu0 0.0
        %510 = vmatprep.subr.mxu0 0.0
        %511 = vmatpush2.msra.mxu0 0.0
        %512 = vmatprep.subr.mxu0 0.0
        %513 = vmatpush2.msra.mxu0 0.0
        %514 = vmatprep.subr.mxu0 0.0
        %515 = vmatpush2.msra.mxu0 0.0
        %516 = vmatprep.mubr.f32.mxu0 0.0
        %517 = vmatmul.mubr.f32.gmra.mxu0 %v245
        %v518 = vpop.f32.mrf.mxu0
        %v519 = vadd.f32 0.0, %v518
        %v520 = vpop.f32.mrf.mxu0
        %v521 = vadd.f32 0.0, %v520
        %522 = vmatprep.mubr.f32.mxu0 0.0
        %523 = vmatmul.mubr.f32.gmra.mxu0 %v246
        %v524 = vpop.f32.mrf.mxu0
        %v525 = vadd.f32 0.0, %v524
        %v526 = vpop.f32.mrf.mxu0
        %v527 = vadd.f32 0.0, %v526
        %528 = vdwg.mxu0
        %529 = vmatprep.subr.mxu0 %v372
        %530 = vmatpush1.msra.mxu0 %v371
        %531 = vmatprep.subr.mxu0 %v364
        %532 = vmatpush1.msra.mxu0 %v363
        %533 = vmatprep.subr.mxu0 %v356
        %534 = vmatpush1.msra.mxu0 %v355
        %535 = vmatprep.subr.mxu0 %v348
        %536 = vmatpush1.msra.mxu0 %v347
        %537 = vmatprep.subr.mxu0 %v340
        %538 = vmatpush1.msra.mxu0 %v339
        %539 = vmatprep.subr.mxu0 %v332
        %540 = vmatpush1.msra.mxu0 %v331
        %541 = vmatprep.subr.mxu0 %v324
        %542 = vmatpush1.msra.mxu0 %v323
        %543 = vmatprep.subr.mxu0 %v316
        %544 = vmatpush1.msra.mxu0 %v315
        %545 = vmatprep.subr.mxu0 %v308
        %546 = vmatpush1.msra.mxu0 %v307
        %547 = vmatprep.subr.mxu0 %v300
        %548 = vmatpush1.msra.mxu0 %v299
        %549 = vmatprep.subr.mxu0 %v292
        %550 = vmatpush1.msra.mxu0 %v291
        %551 = vmatprep.subr.mxu0 %v284
        %552 = vmatpush1.msra.mxu0 %v283
        %553 = vmatprep.subr.mxu0 %v276
        %554 = vmatpush1.msra.mxu0 %v275
        %555 = vmatprep.subr.mxu0 %v268
        %556 = vmatpush1.msra.mxu0 %v267
        %557 = vmatprep.subr.mxu0 %v260
        %558 = vmatpush1.msra.mxu0 %v259
        %559 = vmatprep.subr.mxu0 %v252
        %560 = vmatpush1.msra.mxu0 %v251
        %561 = vmatprep.subr.mxu0 0.0
        %562 = vmatpush2.msra.mxu0 0.0
        %563 = vmatprep.subr.mxu0 0.0
        %564 = vmatpush2.msra.mxu0 0.0
        %565 = vmatprep.subr.mxu0 0.0
        %566 = vmatpush2.msra.mxu0 0.0
        %567 = vmatprep.subr.mxu0 0.0
        %568 = vmatpush2.msra.mxu0 0.0
        %569 = vmatprep.subr.mxu0 0.0
        %570 = vmatpush2.msra.mxu0 0.0
        %571 = vmatprep.subr.mxu0 0.0
        %572 = vmatpush2.msra.mxu0 0.0
        %573 = vmatprep.subr.mxu0 0.0
        %574 = vmatpush2.msra.mxu0 0.0
        %575 = vmatprep.subr.mxu0 0.0
        %576 = vmatpush2.msra.mxu0 0.0
        %577 = vmatprep.subr.mxu0 0.0
        %578 = vmatpush2.msra.mxu0 0.0
        %579 = vmatprep.subr.mxu0 0.0
        %580 = vmatpush2.msra.mxu0 0.0
        %581 = vmatprep.subr.mxu0 0.0
        %582 = vmatpush2.msra.mxu0 0.0
        %583 = vmatprep.subr.mxu0 0.0
        %584 = vmatpush2.msra.mxu0 0.0
        %585 = vmatprep.subr.mxu0 0.0
        %586 = vmatpush2.msra.mxu0 0.0
        %587 = vmatprep.subr.mxu0 0.0
        %588 = vmatpush2.msra.mxu0 0.0
        %589 = vmatprep.subr.mxu0 0.0
        %590 = vmatpush2.msra.mxu0 0.0
        %591 = vmatprep.subr.mxu0 0.0
        %592 = vmatpush2.msra.mxu0 0.0
        %593 = vmatprep.mubr.f32.mxu0 0.0
        %594 = vmatmul.mubr.f32.gmra.mxu0 %v245
        %v595 = vpop.f32.mrf.mxu0
        %v596 = vadd.f32 0.0, %v595
        %v597 = vpop.f32.mrf.mxu0
        %v598 = vadd.f32 0.0, %v597
        %599 = vmatprep.mubr.f32.mxu0 0.0
        %600 = vmatmul.mubr.f32.gmra.mxu0 %v246
        %v601 = vpop.f32.mrf.mxu0
        %v602 = vadd.f32 0.0, %v601
        %v603 = vpop.f32.mrf.mxu0
        %v604 = vadd.f32 0.0, %v603
        %605 = vdwg.mxu0
        %606 = vmatprep.subr.mxu0 %v374
        %607 = vmatpush1.msra.mxu0 %v373
        %608 = vmatprep.subr.mxu0 %v366
        %609 = vmatpush1.msra.mxu0 %v365
        %610 = vmatprep.subr.mxu0 %v358
        %611 = vmatpush1.msra.mxu0 %v357
        %612 = vmatprep.subr.mxu0 %v350
        %613 = vmatpush1.msra.mxu0 %v349
        %614 = vmatprep.subr.mxu0 %v342
        %615 = vmatpush1.msra.mxu0 %v341
        %616 = vmatprep.subr.mxu0 %v334
        %617 = vmatpush1.msra.mxu0 %v333
        %618 = vmatprep.subr.mxu0 %v326
        %619 = vmatpush1.msra.mxu0 %v325
        %620 = vmatprep.subr.mxu0 %v318
        %621 = vmatpush1.msra.mxu0 %v317
        %622 = vmatprep.subr.mxu0 %v310
        %623 = vmatpush1.msra.mxu0 %v309
        %624 = vmatprep.subr.mxu0 %v302
        %625 = vmatpush1.msra.mxu0 %v301
        %626 = vmatprep.subr.mxu0 %v294
        %627 = vmatpush1.msra.mxu0 %v293
        %628 = vmatprep.subr.mxu0 %v286
        %629 = vmatpush1.msra.mxu0 %v285
        %630 = vmatprep.subr.mxu0 %v278
        %631 = vmatpush1.msra.mxu0 %v277
        %632 = vmatprep.subr.mxu0 %v270
        %633 = vmatpush1.msra.mxu0 %v269
        %634 = vmatprep.subr.mxu0 %v262
        %635 = vmatpush1.msra.mxu0 %v261
        %636 = vmatprep.subr.mxu0 %v254
        %637 = vmatpush1.msra.mxu0 %v253
        %638 = vmatprep.subr.mxu0 0.0
        %639 = vmatpush2.msra.mxu0 0.0
        %640 = vmatprep.subr.mxu0 0.0
        %641 = vmatpush2.msra.mxu0 0.0
        %642 = vmatprep.subr.mxu0 0.0
        %643 = vmatpush2.msra.mxu0 0.0
        %644 = vmatprep.subr.mxu0 0.0
        %645 = vmatpush2.msra.mxu0 0.0
        %646 = vmatprep.subr.mxu0 0.0
        %647 = vmatpush2.msra.mxu0 0.0
        %648 = vmatprep.subr.mxu0 0.0
        %649 = vmatpush2.msra.mxu0 0.0
        %650 = vmatprep.subr.mxu0 0.0
        %651 = vmatpush2.msra.mxu0 0.0
        %652 = vmatprep.subr.mxu0 0.0
        %653 = vmatpush2.msra.mxu0 0.0
        %654 = vmatprep.subr.mxu0 0.0
        %655 = vmatpush2.msra.mxu0 0.0
        %656 = vmatprep.subr.mxu0 0.0
        %657 = vmatpush2.msra.mxu0 0.0
        %658 = vmatprep.subr.mxu0 0.0
        %659 = vmatpush2.msra.mxu0 0.0
        %660 = vmatprep.subr.mxu0 0.0
        %661 = vmatpush2.msra.mxu0 0.0
        %662 = vmatprep.subr.mxu0 0.0
        %663 = vmatpush2.msra.mxu0 0.0
        %664 = vmatprep.subr.mxu0 0.0
        %665 = vmatpush2.msra.mxu0 0.0
        %666 = vmatprep.subr.mxu0 0.0
        %667 = vmatpush2.msra.mxu0 0.0
        %668 = vmatprep.subr.mxu0 0.0
        %669 = vmatpush2.msra.mxu0 0.0
        %670 = vmatprep.mubr.f32.mxu0 0.0
        %671 = vmatmul.mubr.f32.gmra.mxu0 %v245
        %v672 = vpop.f32.mrf.mxu0
        %v673 = vadd.f32 0.0, %v672
        %v674 = vpop.f32.mrf.mxu0
        %v675 = vadd.f32 0.0, %v674
        %676 = vmatprep.mubr.f32.mxu0 0.0
        %677 = vmatmul.mubr.f32.gmra.mxu0 %v246
        %v678 = vpop.f32.mrf.mxu0
        %v679 = vadd.f32 0.0, %v678
        %v680 = vpop.f32.mrf.mxu0
        %v681 = vadd.f32 0.0, %v680
        %682 = vdwg.mxu0
        %v683 = vmul.f32 %v448, %v448
        %v684 = vmul.f32 %v450, %v450
        %v685 = vmul.f32 %v525, %v525
        %v686 = vmul.f32 %v527, %v527
        %v687 = vmul.f32 %v602, %v602
        %v688 = vmul.f32 %v604, %v604
        %v689 = vmul.f32 %v679, %v679
        %v690 = vmul.f32 %v681, %v681
        %vm691 = vcmask 1041408
        %v692 = vsel %vm691, %v683, 0.0
        %v693 = vsel %vm691, %v684, 0.0
        %v694 = vadd.f32 %v692, %v693
        %v695 = vsel %vm691, %v685, 0.0
        %v696 = vadd.f32 %v694, %v695
        %v697 = vsel %vm691, %v686, 0.0
        %v698 = vadd.f32 %v696, %v697
        %v699 = vsel %vm691, %v687, 0.0
        %v700 = vadd.f32 %v698, %v699
        %v701 = vsel %vm691, %v688, 0.0
        %v702 = vadd.f32 %v700, %v701
        %v703 = vsel %vm691, %v689, 0.0
        %v704 = vadd.f32 %v702, %v703
        %v705 = vsel %vm691, %v690, 0.0
        %v706 = vadd.f32 %v704, %v705
        %707 = vadd.xlane.f32.xlu0 %v706
        %v708 = vpop.xlane.xlu0 %707
        %v709 = vmax.f32 %v708, 1e-24
        %v710 = vrsqrt.pop %v709
        %v711 = vmul.f32 %v448, %v710
        %v712 = vmul.f32 %v450, %v710
        %v713 = vmul.f32 %v525, %v710
        %v714 = vmul.f32 %v527, %v710
        %v715 = vmul.f32 %v602, %v710
        %v716 = vmul.f32 %v604, %v710
        %v717 = vmul.f32 %v679, %v710
        %v718 = vmul.f32 %v681, %v710
        %v727 = vcombine.low %v711, %v712
        %v728 = vcombine.low %v713, %v714
        %v730 = vunpack.c.l.s4 1983009808
        %v731 = vunpack.c.0.s8 %v730
        %v732 = vlaneseq
        %v733 = vshrl.u32 %v732, 7
        %v734 = vsub.s32 %v731, %v733
        %v735 = vrot.slane %v727, %v734
        %v737 = vunpack.c.l.s4 1983009808
        %v738 = vunpack.c.0.s8 %v737
        %v739 = vlaneseq
        %v740 = vshrl.u32 %v739, 7
        %v741 = vsub.s32 %v738, %v740
        %v742 = vrot.slane %v728, %v741
        %v743 = vcombine.low %v735, %v742
        %v744 = vcombine.low %v715, %v716
        %v745 = vcombine.low %v717, %v718
        %v747 = vunpack.c.l.s4 1983009808
        %v748 = vunpack.c.0.s8 %v747
        %v749 = vlaneseq
        %v750 = vshrl.u32 %v749, 7
        %v751 = vsub.s32 %v748, %v750
        %v752 = vrot.slane %v744, %v751
        %v754 = vunpack.c.l.s4 1983009808
        %v755 = vunpack.c.0.s8 %v754
        %v756 = vlaneseq
        %v757 = vshrl.u32 %v756, 7
        %v758 = vsub.s32 %v755, %v757
        %v759 = vrot.slane %v745, %v758
        %v760 = vcombine.low %v752, %v759
        %763 = vst [vmem:[%s244] sm:$0xff] %v743
        %764 = vst [vmem:[%s244 + $0x8] sm:$0xff] %v760
        %v765 = vld [vmem:[#allocation7] sm:$0xff]
        %v766 = vld [vmem:[#allocation7 + $0x8] sm:$0xff]
        %v767 = vld [vmem:[#allocation7 + $0x10] sm:$0xff]
        %v768 = vld [vmem:[#allocation7 + $0x18] sm:$0xff]
        %v769 = vld [vmem:[#allocation7 + $0x20] sm:$0xff]
        %v770 = vld [vmem:[#allocation7 + $0x28] sm:$0xff]
        %v771 = vld [vmem:[#allocation7 + $0x30] sm:$0xff]
        %v772 = vld [vmem:[#allocation7 + $0x38] sm:$0xff]
        %v773 = vld [vmem:[#allocation7 + $0x40] sm:$0xff]
        %v774 = vld [vmem:[#allocation7 + $0x48] sm:$0xff]
        %v775 = vld [vmem:[#allocation7 + $0x50] sm:$0xff]
        %v776 = vld [vmem:[#allocation7 + $0x58] sm:$0xff]
        %v777 = vld [vmem:[#allocation7 + $0x60] sm:$0xff]
        %v778 = vld [vmem:[#allocation7 + $0x68] sm:$0xff]
        %v779 = vld [vmem:[#allocation7 + $0x70] sm:$0xff]
        %v780 = vld [vmem:[#allocation7 + $0x78] sm:$0xff]
        %v781 = vld [vmem:[#allocation7 + $0x80] sm:$0xff]
        %v782 = vld [vmem:[#allocation7 + $0x88] sm:$0xff]
        %v783 = vld [vmem:[#allocation7 + $0x90] sm:$0xff]
        %v784 = vld [vmem:[#allocation7 + $0x98] sm:$0xff]
        %v785 = vld [vmem:[#allocation7 + $0xa0] sm:$0xff]
        %v786 = vld [vmem:[#allocation7 + $0xa8] sm:$0xff]
        %v787 = vld [vmem:[#allocation7 + $0xb0] sm:$0xff]
        %v788 = vld [vmem:[#allocation7 + $0xb8] sm:$0xff]
        %v789 = vld [vmem:[#allocation7 + $0xc0] sm:$0xff]
        %v790 = vld [vmem:[#allocation7 + $0xc8] sm:$0xff]
        %v791 = vld [vmem:[#allocation7 + $0xd0] sm:$0xff]
        %v792 = vld [vmem:[#allocation7 + $0xd8] sm:$0xff]
        %v793 = vld [vmem:[#allocation7 + $0xe0] sm:$0xff]
        %v794 = vld [vmem:[#allocation7 + $0xe8] sm:$0xff]
        %v795 = vld [vmem:[#allocation7 + $0xf0] sm:$0xff]
        %v796 = vld [vmem:[#allocation7 + $0xf8] sm:$0xff]
        %v797 = vld [vmem:[#allocation7 + $0x100] sm:$0xff]
        %v798 = vld [vmem:[#allocation7 + $0x108] sm:$0xff]
        %v799 = vld [vmem:[#allocation7 + $0x110] sm:$0xff]
        %v800 = vld [vmem:[#allocation7 + $0x118] sm:$0xff]
        %v801 = vld [vmem:[#allocation7 + $0x120] sm:$0xff]
        %v802 = vld [vmem:[#allocation7 + $0x128] sm:$0xff]
        %v803 = vld [vmem:[#allocation7 + $0x130] sm:$0xff]
        %v804 = vld [vmem:[#allocation7 + $0x138] sm:$0xff]
        %v805 = vld [vmem:[#allocation7 + $0x140] sm:$0xff]
        %v806 = vld [vmem:[#allocation7 + $0x148] sm:$0xff]
        %v807 = vld [vmem:[#allocation7 + $0x150] sm:$0xff]
        %v808 = vld [vmem:[#allocation7 + $0x158] sm:$0xff]
        %v809 = vld [vmem:[#allocation7 + $0x160] sm:$0xff]
        %v810 = vld [vmem:[#allocation7 + $0x168] sm:$0xff]
        %v811 = vld [vmem:[#allocation7 + $0x170] sm:$0xff]
        %v812 = vld [vmem:[#allocation7 + $0x178] sm:$0xff]
        %v813 = vld [vmem:[#allocation7 + $0x180] sm:$0xff]
        %v814 = vld [vmem:[#allocation7 + $0x188] sm:$0xff]
        %v815 = vld [vmem:[#allocation7 + $0x190] sm:$0xff]
        %v816 = vld [vmem:[#allocation7 + $0x198] sm:$0xff]
        %v817 = vld [vmem:[#allocation7 + $0x1a0] sm:$0xff]
        %v818 = vld [vmem:[#allocation7 + $0x1a8] sm:$0xff]
        %v819 = vld [vmem:[#allocation7 + $0x1b0] sm:$0xff]
        %v820 = vld [vmem:[#allocation7 + $0x1b8] sm:$0xff]
        %v821 = vld [vmem:[#allocation7 + $0x1c0] sm:$0xff]
        %v822 = vld [vmem:[#allocation7 + $0x1c8] sm:$0xff]
        %v823 = vld [vmem:[#allocation7 + $0x1d0] sm:$0xff]
        %v824 = vld [vmem:[#allocation7 + $0x1d8] sm:$0xff]
        %v825 = vld [vmem:[#allocation7 + $0x1e0] sm:$0xff]
        %v826 = vld [vmem:[#allocation7 + $0x1e8] sm:$0xff]
        %v827 = vld [vmem:[#allocation7 + $0x1f0] sm:$0xff]
        %v828 = vld [vmem:[#allocation7 + $0x1f8] sm:$0xff]
        %v829 = vld [vmem:[#allocation7 + $0x200] sm:$0xff]
        %v830 = vld [vmem:[#allocation7 + $0x208] sm:$0xff]
        %v831 = vld [vmem:[#allocation7 + $0x210] sm:$0xff]
        %v832 = vld [vmem:[#allocation7 + $0x218] sm:$0xff]
        %v833 = vld [vmem:[#allocation7 + $0x220] sm:$0xff]
        %v834 = vld [vmem:[#allocation7 + $0x228] sm:$0xff]
        %v835 = vld [vmem:[#allocation7 + $0x230] sm:$0xff]
        %v836 = vld [vmem:[#allocation7 + $0x238] sm:$0xff]
        %v837 = vld [vmem:[#allocation7 + $0x240] sm:$0xff]
        %v838 = vld [vmem:[#allocation7 + $0x248] sm:$0xff]
        %v839 = vld [vmem:[#allocation7 + $0x250] sm:$0xff]
        %v840 = vld [vmem:[#allocation7 + $0x258] sm:$0xff]
        %v841 = vld [vmem:[#allocation7 + $0x260] sm:$0xff]
        %v842 = vld [vmem:[#allocation7 + $0x268] sm:$0xff]
        %v843 = vld [vmem:[#allocation7 + $0x270] sm:$0xff]
        %v844 = vld [vmem:[#allocation7 + $0x278] sm:$0xff]
        %v845 = vld [vmem:[#allocation7 + $0x280] sm:$0xff]
        %v846 = vld [vmem:[#allocation7 + $0x288] sm:$0xff]
        %v847 = vld [vmem:[#allocation7 + $0x290] sm:$0xff]
        %v848 = vld [vmem:[#allocation7 + $0x298] sm:$0xff]
        %v849 = vld [vmem:[#allocation7 + $0x2a0] sm:$0xff]
        %v850 = vld [vmem:[#allocation7 + $0x2a8] sm:$0xff]
        %v851 = vld [vmem:[#allocation7 + $0x2b0] sm:$0xff]
        %v852 = vld [vmem:[#allocation7 + $0x2b8] sm:$0xff]
        %v853 = vld [vmem:[#allocation7 + $0x2c0] sm:$0xff]
        %v854 = vld [vmem:[#allocation7 + $0x2c8] sm:$0xff]
        %v855 = vld [vmem:[#allocation7 + $0x2d0] sm:$0xff]
        %v856 = vld [vmem:[#allocation7 + $0x2d8] sm:$0xff]
        %v857 = vld [vmem:[#allocation7 + $0x2e0] sm:$0xff]
        %v858 = vld [vmem:[#allocation7 + $0x2e8] sm:$0xff]
        %v859 = vld [vmem:[#allocation7 + $0x2f0] sm:$0xff]
        %v860 = vld [vmem:[#allocation7 + $0x2f8] sm:$0xff]
        %v861 = vld [vmem:[#allocation7 + $0x300] sm:$0xff]
        %v862 = vld [vmem:[#allocation7 + $0x308] sm:$0xff]
        %v863 = vld [vmem:[#allocation7 + $0x310] sm:$0xff]
        %v864 = vld [vmem:[#allocation7 + $0x318] sm:$0xff]
        %v865 = vld [vmem:[#allocation7 + $0x320] sm:$0xff]
        %v866 = vld [vmem:[#allocation7 + $0x328] sm:$0xff]
        %v867 = vld [vmem:[#allocation7 + $0x330] sm:$0xff]
        %v868 = vld [vmem:[#allocation7 + $0x338] sm:$0xff]
        %v869 = vld [vmem:[#allocation7 + $0x340] sm:$0xff]
        %v870 = vld [vmem:[#allocation7 + $0x348] sm:$0xff]
        %v871 = vld [vmem:[#allocation7 + $0x350] sm:$0xff]
        %v872 = vld [vmem:[#allocation7 + $0x358] sm:$0xff]
        %v873 = vld [vmem:[#allocation7 + $0x360] sm:$0xff]
        %v874 = vld [vmem:[#allocation7 + $0x368] sm:$0xff]
        %v875 = vld [vmem:[#allocation7 + $0x370] sm:$0xff]
        %v876 = vld [vmem:[#allocation7 + $0x378] sm:$0xff]
        %v877 = vld [vmem:[#allocation7 + $0x380] sm:$0xff]
        %v878 = vld [vmem:[#allocation7 + $0x388] sm:$0xff]
        %v879 = vld [vmem:[#allocation7 + $0x390] sm:$0xff]
        %v880 = vld [vmem:[#allocation7 + $0x398] sm:$0xff]
        %v881 = vld [vmem:[#allocation7 + $0x3a0] sm:$0xff]
        %v882 = vld [vmem:[#allocation7 + $0x3a8] sm:$0xff]
        %v883 = vld [vmem:[#allocation7 + $0x3b0] sm:$0xff]
        %v884 = vld [vmem:[#allocation7 + $0x3b8] sm:$0xff]
        %v885 = vld [vmem:[#allocation7 + $0x3c0] sm:$0xff]
        %v886 = vld [vmem:[#allocation7 + $0x3c8] sm:$0xff]
        %v887 = vld [vmem:[#allocation7 + $0x3d0] sm:$0xff]
        %v888 = vld [vmem:[#allocation7 + $0x3d8] sm:$0xff]
        %v889 = vld [vmem:[#allocation7 + $0x3e0] sm:$0xff]
        %v890 = vld [vmem:[#allocation7 + $0x3e8] sm:$0xff]
        %v891 = vld [vmem:[#allocation7 + $0x3f0] sm:$0xff]
        %v892 = vld [vmem:[#allocation7 + $0x3f8] sm:$0xff]
        %v893 = vld [vmem:[#allocation7 + $0x400] sm:$0xff]
        %v894 = vld [vmem:[#allocation7 + $0x408] sm:$0xff]
        %v895 = vld [vmem:[#allocation7 + $0x410] sm:$0xff]
        %v896 = vld [vmem:[#allocation7 + $0x418] sm:$0xff]
        %v897 = vld [vmem:[#allocation7 + $0x420] sm:$0xff]
        %v898 = vld [vmem:[#allocation7 + $0x428] sm:$0xff]
        %v899 = vld [vmem:[#allocation7 + $0x430] sm:$0xff]
        %v900 = vld [vmem:[#allocation7 + $0x438] sm:$0xff]
        %v901 = vld [vmem:[#allocation7 + $0x440] sm:$0xff]
        %v902 = vld [vmem:[#allocation7 + $0x448] sm:$0xff]
        %v903 = vld [vmem:[#allocation7 + $0x450] sm:$0xff]
        %v904 = vld [vmem:[#allocation7 + $0x458] sm:$0xff]
        %v905 = vld [vmem:[#allocation7 + $0x460] sm:$0xff]
        %v906 = vld [vmem:[#allocation7 + $0x468] sm:$0xff]
        %v907 = vld [vmem:[#allocation7 + $0x470] sm:$0xff]
        %v908 = vld [vmem:[#allocation7 + $0x478] sm:$0xff]
        %v909 = vld [vmem:[#allocation7 + $0x480] sm:$0xff]
        %v910 = vld [vmem:[#allocation7 + $0x488] sm:$0xff]
        %v911 = vld [vmem:[#allocation7 + $0x490] sm:$0xff]
        %v912 = vld [vmem:[#allocation7 + $0x498] sm:$0xff]
        %v913 = vld [vmem:[#allocation7 + $0x4a0] sm:$0xff]
        %v914 = vld [vmem:[#allocation7 + $0x4a8] sm:$0xff]
        %v915 = vld [vmem:[#allocation7 + $0x4b0] sm:$0xff]
        %v916 = vld [vmem:[#allocation7 + $0x4b8] sm:$0xff]
        %v917 = vld [vmem:[#allocation7 + $0x4c0] sm:$0xff]
        %v918 = vld [vmem:[#allocation7 + $0x4c8] sm:$0xff]
        %v919 = vld [vmem:[#allocation7 + $0x4d0] sm:$0xff]
        %v920 = vld [vmem:[#allocation7 + $0x4d8] sm:$0xff]
        %v921 = vld [vmem:[#allocation7 + $0x4e0] sm:$0xff]
        %v922 = vld [vmem:[#allocation7 + $0x4e8] sm:$0xff]
        %v923 = vld [vmem:[#allocation7 + $0x4f0] sm:$0xff]
        %v924 = vld [vmem:[#allocation7 + $0x4f8] sm:$0xff]
        %v925 = vld [vmem:[#allocation7 + $0x500] sm:$0xff]
        %v926 = vld [vmem:[#allocation7 + $0x508] sm:$0xff]
        %v927 = vld [vmem:[#allocation7 + $0x510] sm:$0xff]
        %v928 = vld [vmem:[#allocation7 + $0x518] sm:$0xff]
        %v929 = vld [vmem:[#allocation7 + $0x520] sm:$0xff]
        %v930 = vld [vmem:[#allocation7 + $0x528] sm:$0xff]
        %v931 = vld [vmem:[#allocation7 + $0x530] sm:$0xff]
        %v932 = vld [vmem:[#allocation7 + $0x538] sm:$0xff]
        %v933 = vld [vmem:[#allocation7 + $0x540] sm:$0xff]
        %v934 = vld [vmem:[#allocation7 + $0x548] sm:$0xff]
        %v935 = vld [vmem:[#allocation7 + $0x550] sm:$0xff]
        %v936 = vld [vmem:[#allocation7 + $0x558] sm:$0xff]
        %v937 = vld [vmem:[#allocation7 + $0x560] sm:$0xff]
        %v938 = vld [vmem:[#allocation7 + $0x568] sm:$0xff]
        %v939 = vld [vmem:[#allocation7 + $0x570] sm:$0xff]
        %v940 = vld [vmem:[#allocation7 + $0x578] sm:$0xff]
        %v941 = vld [vmem:[#allocation7 + $0x580] sm:$0xff]
        %v942 = vld [vmem:[#allocation7 + $0x588] sm:$0xff]
        %v943 = vld [vmem:[#allocation7 + $0x590] sm:$0xff]
        %v944 = vld [vmem:[#allocation7 + $0x598] sm:$0xff]
        %v945 = vld [vmem:[#allocation7 + $0x5a0] sm:$0xff]
        %v946 = vld [vmem:[#allocation7 + $0x5a8] sm:$0xff]
        %v947 = vld [vmem:[#allocation7 + $0x5b0] sm:$0xff]
        %v948 = vld [vmem:[#allocation7 + $0x5b8] sm:$0xff]
        %v949 = vld [vmem:[#allocation7 + $0x5c0] sm:$0xff]
        %v950 = vld [vmem:[#allocation7 + $0x5c8] sm:$0xff]
        %v951 = vld [vmem:[#allocation7 + $0x5d0] sm:$0xff]
        %v952 = vld [vmem:[#allocation7 + $0x5d8] sm:$0xff]
        %v953 = vld [vmem:[#allocation7 + $0x5e0] sm:$0xff]
        %v954 = vld [vmem:[#allocation7 + $0x5e8] sm:$0xff]
        %v955 = vld [vmem:[#allocation7 + $0x5f0] sm:$0xff]
        %v956 = vld [vmem:[#allocation7 + $0x5f8] sm:$0xff]
        %v957 = vld [vmem:[#allocation7 + $0x600] sm:$0xff]
        %v958 = vld [vmem:[#allocation7 + $0x608] sm:$0xff]
        %v959 = vld [vmem:[#allocation7 + $0x610] sm:$0xff]
        %v960 = vld [vmem:[#allocation7 + $0x618] sm:$0xff]
        %v961 = vld [vmem:[#allocation7 + $0x620] sm:$0xff]
        %v962 = vld [vmem:[#allocation7 + $0x628] sm:$0xff]
        %v963 = vld [vmem:[#allocation7 + $0x630] sm:$0xff]
        %v964 = vld [vmem:[#allocation7 + $0x638] sm:$0xff]
        %v965 = vld [vmem:[#allocation7 + $0x640] sm:$0xff]
        %v966 = vld [vmem:[#allocation7 + $0x648] sm:$0xff]
        %v967 = vld [vmem:[#allocation7 + $0x650] sm:$0xff]
        %v968 = vld [vmem:[#allocation7 + $0x658] sm:$0xff]
        %v969 = vld [vmem:[#allocation7 + $0x660] sm:$0xff]
        %v970 = vld [vmem:[#allocation7 + $0x668] sm:$0xff]
        %v971 = vld [vmem:[#allocation7 + $0x670] sm:$0xff]
        %v972 = vld [vmem:[#allocation7 + $0x678] sm:$0xff]
        %v973 = vld [vmem:[#allocation7 + $0x680] sm:$0xff]
        %v974 = vld [vmem:[#allocation7 + $0x688] sm:$0xff]
        %v975 = vld [vmem:[#allocation7 + $0x690] sm:$0xff]
        %v976 = vld [vmem:[#allocation7 + $0x698] sm:$0xff]
        %v977 = vld [vmem:[#allocation7 + $0x6a0] sm:$0xff]
        %v978 = vld [vmem:[#allocation7 + $0x6a8] sm:$0xff]
        %v979 = vld [vmem:[#allocation7 + $0x6b0] sm:$0xff]
        %v980 = vld [vmem:[#allocation7 + $0x6b8] sm:$0xff]
        %v981 = vld [vmem:[#allocation7 + $0x6c0] sm:$0xff]
        %v982 = vld [vmem:[#allocation7 + $0x6c8] sm:$0xff]
        %v983 = vld [vmem:[#allocation7 + $0x6d0] sm:$0xff]
        %v984 = vld [vmem:[#allocation7 + $0x6d8] sm:$0xff]
        %v985 = vld [vmem:[#allocation7 + $0x6e0] sm:$0xff]
        %v986 = vld [vmem:[#allocation7 + $0x6e8] sm:$0xff]
        %v987 = vld [vmem:[#allocation7 + $0x6f0] sm:$0xff]
        %v988 = vld [vmem:[#allocation7 + $0x6f8] sm:$0xff]
        %v989 = vld [vmem:[#allocation7 + $0x700] sm:$0xff]
        %v990 = vld [vmem:[#allocation7 + $0x708] sm:$0xff]
        %v991 = vld [vmem:[#allocation7 + $0x710] sm:$0xff]
        %v992 = vld [vmem:[#allocation7 + $0x718] sm:$0xff]
        %v993 = vld [vmem:[#allocation7 + $0x720] sm:$0xff]
        %v994 = vld [vmem:[#allocation7 + $0x728] sm:$0xff]
        %v995 = vld [vmem:[#allocation7 + $0x730] sm:$0xff]
        %v996 = vld [vmem:[#allocation7 + $0x738] sm:$0xff]
        %v997 = vld [vmem:[#allocation7 + $0x740] sm:$0xff]
        %v998 = vld [vmem:[#allocation7 + $0x748] sm:$0xff]
        %v999 = vld [vmem:[#allocation7 + $0x750] sm:$0xff]
        %v1000 = vld [vmem:[#allocation7 + $0x758] sm:$0xff]
        %v1001 = vld [vmem:[#allocation7 + $0x760] sm:$0xff]
        %v1002 = vld [vmem:[#allocation7 + $0x768] sm:$0xff]
        %v1003 = vld [vmem:[#allocation7 + $0x770] sm:$0xff]
        %v1004 = vld [vmem:[#allocation7 + $0x778] sm:$0xff]
        %v1005 = vld [vmem:[#allocation7 + $0x780] sm:$0xff]
        %v1006 = vld [vmem:[#allocation7 + $0x788] sm:$0xff]
        %v1007 = vld [vmem:[#allocation7 + $0x790] sm:$0xff]
        %v1008 = vld [vmem:[#allocation7 + $0x798] sm:$0xff]
        %v1009 = vld [vmem:[#allocation7 + $0x7a0] sm:$0xff]
        %v1010 = vld [vmem:[#allocation7 + $0x7a8] sm:$0xff]
        %v1011 = vld [vmem:[#allocation7 + $0x7b0] sm:$0xff]
        %v1012 = vld [vmem:[#allocation7 + $0x7b8] sm:$0xff]
        %v1013 = vld [vmem:[#allocation7 + $0x7c0] sm:$0xff]
        %v1014 = vld [vmem:[#allocation7 + $0x7c8] sm:$0xff]
        %v1015 = vld [vmem:[#allocation7 + $0x7d0] sm:$0xff]
        %v1016 = vld [vmem:[#allocation7 + $0x7d8] sm:$0xff]
        %v1017 = vld [vmem:[#allocation7 + $0x7e0] sm:$0xff]
        %v1018 = vld [vmem:[#allocation7 + $0x7e8] sm:$0xff]
        %v1019 = vld [vmem:[#allocation7 + $0x7f0] sm:$0xff]
        %v1020 = vld [vmem:[#allocation7 + $0x7f8] sm:$0xff]
        %v1021 = vld [vmem:[%s3] sm:$0x3]
        %v1023 = vlaneseq
        %v1024 = vshrl.u32 %v1023, 7
        %v1025 = vsub.s32 0, %v1024
        %v1026 = vrot.slane %v1021, %v1025
        %v1027 = vlaneseq
        %v1028 = vshrl.u32 %v1027, 7
        %v1029 = vsub.s32 1, %v1028
        %v1030 = vrot.slane %v1021, %v1029
        %1033 = vmatprep.subr.mxu0 %v796
        %1034 = vmatpush1.msra.mxu0 %v795
        %1035 = vmatprep.subr.mxu0 %v794
        %1036 = vmatpush1.msra.mxu0 %v793
        %1037 = vmatprep.subr.mxu0 %v792
        %1038 = vmatpush1.msra.mxu0 %v791
        %1039 = vmatprep.subr.mxu0 %v790
        %1040 = vmatpush1.msra.mxu0 %v789
        %1041 = vmatprep.subr.mxu0 %v788
        %1042 = vmatpush1.msra.mxu0 %v787
        %1043 = vmatprep.subr.mxu0 %v786
        %1044 = vmatpush1.msra.mxu0 %v785
        %1045 = vmatprep.subr.mxu0 %v784
        %1046 = vmatpush1.msra.mxu0 %v783
        %1047 = vmatprep.subr.mxu0 %v782
        %1048 = vmatpush1.msra.mxu0 %v781
        %1049 = vmatprep.subr.mxu0 %v780
        %1050 = vmatpush1.msra.mxu0 %v779
        %1051 = vmatprep.subr.mxu0 %v778
        %1052 = vmatpush1.msra.mxu0 %v777
        %1053 = vmatprep.subr.mxu0 %v776
        %1054 = vmatpush1.msra.mxu0 %v775
        %1055 = vmatprep.subr.mxu0 %v774
        %1056 = vmatpush1.msra.mxu0 %v773
        %1057 = vmatprep.subr.mxu0 %v772
        %1058 = vmatpush1.msra.mxu0 %v771
        %1059 = vmatprep.subr.mxu0 %v770
        %1060 = vmatpush1.msra.mxu0 %v769
        %1061 = vmatprep.subr.mxu0 %v768
        %1062 = vmatpush1.msra.mxu0 %v767
        %1063 = vmatprep.subr.mxu0 %v766
        %1064 = vmatpush1.msra.mxu0 %v765
        %1065 = vmatprep.subr.mxu0 %v828
        %1066 = vmatpush2.msra.mxu0 %v827
        %1067 = vmatprep.subr.mxu0 %v826
        %1068 = vmatpush2.msra.mxu0 %v825
        %1069 = vmatprep.subr.mxu0 %v824
        %1070 = vmatpush2.msra.mxu0 %v823
        %1071 = vmatprep.subr.mxu0 %v822
        %1072 = vmatpush2.msra.mxu0 %v821
        %1073 = vmatprep.subr.mxu0 %v820
        %1074 = vmatpush2.msra.mxu0 %v819
        %1075 = vmatprep.subr.mxu0 %v818
        %1076 = vmatpush2.msra.mxu0 %v817
        %1077 = vmatprep.subr.mxu0 %v816
        %1078 = vmatpush2.msra.mxu0 %v815
        %1079 = vmatprep.subr.mxu0 %v814
        %1080 = vmatpush2.msra.mxu0 %v813
        %1081 = vmatprep.subr.mxu0 %v812
        %1082 = vmatpush2.msra.mxu0 %v811
        %1083 = vmatprep.subr.mxu0 %v810
        %1084 = vmatpush2.msra.mxu0 %v809
        %1085 = vmatprep.subr.mxu0 %v808
        %1086 = vmatpush2.msra.mxu0 %v807
        %1087 = vmatprep.subr.mxu0 %v806
        %1088 = vmatpush2.msra.mxu0 %v805
        %1089 = vmatprep.subr.mxu0 %v804
        %1090 = vmatpush2.msra.mxu0 %v803
        %1091 = vmatprep.subr.mxu0 %v802
        %1092 = vmatpush2.msra.mxu0 %v801
        %1093 = vmatprep.subr.mxu0 %v800
        %1094 = vmatpush2.msra.mxu0 %v799
        %1095 = vmatprep.subr.mxu0 %v798
        %1096 = vmatpush2.msra.mxu0 %v797
        %1097 = vmatprep.mubr.f32.mxu0 %v444
        %1098 = vmatmul.mubr.f32.gmra.mxu0 %v442
        %v1099 = vpop.f32.mrf.mxu0
        %v1100 = vadd.f32 %v1026, %v1099
        %v1101 = vpop.f32.mrf.mxu0
        %v1102 = vadd.f32 %v1030, %v1101
        %1103 = vdwg.mxu0
        %1104 = vmatprep.subr.mxu0 %v860
        %1105 = vmatpush1.msra.mxu0 %v859
        %1106 = vmatprep.subr.mxu0 %v858
        %1107 = vmatpush1.msra.mxu0 %v857
        %1108 = vmatprep.subr.mxu0 %v856
        %1109 = vmatpush1.msra.mxu0 %v855
        %1110 = vmatprep.subr.mxu0 %v854
        %1111 = vmatpush1.msra.mxu0 %v853
        %1112 = vmatprep.subr.mxu0 %v852
        %1113 = vmatpush1.msra.mxu0 %v851
        %1114 = vmatprep.subr.mxu0 %v850
        %1115 = vmatpush1.msra.mxu0 %v849
        %1116 = vmatprep.subr.mxu0 %v848
        %1117 = vmatpush1.msra.mxu0 %v847
        %1118 = vmatprep.subr.mxu0 %v846
        %1119 = vmatpush1.msra.mxu0 %v845
        %1120 = vmatprep.subr.mxu0 %v844
        %1121 = vmatpush1.msra.mxu0 %v843
        %1122 = vmatprep.subr.mxu0 %v842
        %1123 = vmatpush1.msra.mxu0 %v841
        %1124 = vmatprep.subr.mxu0 %v840
        %1125 = vmatpush1.msra.mxu0 %v839
        %1126 = vmatprep.subr.mxu0 %v838
        %1127 = vmatpush1.msra.mxu0 %v837
        %1128 = vmatprep.subr.mxu0 %v836
        %1129 = vmatpush1.msra.mxu0 %v835
        %1130 = vmatprep.subr.mxu0 %v834
        %1131 = vmatpush1.msra.mxu0 %v833
        %1132 = vmatprep.subr.mxu0 %v832
        %1133 = vmatpush1.msra.mxu0 %v831
        %1134 = vmatprep.subr.mxu0 %v830
        %1135 = vmatpush1.msra.mxu0 %v829
        %1136 = vmatprep.subr.mxu0 %v892
        %1137 = vmatpush2.msra.mxu0 %v891
        %1138 = vmatprep.subr.mxu0 %v890
        %1139 = vmatpush2.msra.mxu0 %v889
        %1140 = vmatprep.subr.mxu0 %v888
        %1141 = vmatpush2.msra.mxu0 %v887
        %1142 = vmatprep.subr.mxu0 %v886
        %1143 = vmatpush2.msra.mxu0 %v885
        %1144 = vmatprep.subr.mxu0 %v884
        %1145 = vmatpush2.msra.mxu0 %v883
        %1146 = vmatprep.subr.mxu0 %v882
        %1147 = vmatpush2.msra.mxu0 %v881
        %1148 = vmatprep.subr.mxu0 %v880
        %1149 = vmatpush2.msra.mxu0 %v879
        %1150 = vmatprep.subr.mxu0 %v878
        %1151 = vmatpush2.msra.mxu0 %v877
        %1152 = vmatprep.subr.mxu0 %v876
        %1153 = vmatpush2.msra.mxu0 %v875
        %1154 = vmatprep.subr.mxu0 %v874
        %1155 = vmatpush2.msra.mxu0 %v873
        %1156 = vmatprep.subr.mxu0 %v872
        %1157 = vmatpush2.msra.mxu0 %v871
        %1158 = vmatprep.subr.mxu0 %v870
        %1159 = vmatpush2.msra.mxu0 %v869
        %1160 = vmatprep.subr.mxu0 %v868
        %1161 = vmatpush2.msra.mxu0 %v867
        %1162 = vmatprep.subr.mxu0 %v866
        %1163 = vmatpush2.msra.mxu0 %v865
        %1164 = vmatprep.subr.mxu0 %v864
        %1165 = vmatpush2.msra.mxu0 %v863
        %1166 = vmatprep.subr.mxu0 %v862
        %1167 = vmatpush2.msra.mxu0 %v861
        %1168 = vmatprep.mubr.f32.mxu0 %v521
        %1169 = vmatmul.mubr.f32.gmra.mxu0 %v519
        %v1170 = vpop.f32.mrf.mxu0
        %v1171 = vadd.f32 %v1100, %v1170
        %v1172 = vpop.f32.mrf.mxu0
        %v1173 = vadd.f32 %v1102, %v1172
        %1174 = vdwg.mxu0
        %1175 = vmatprep.subr.mxu0 %v924
        %1176 = vmatpush1.msra.mxu0 %v923
        %1177 = vmatprep.subr.mxu0 %v922
        %1178 = vmatpush1.msra.mxu0 %v921
        %1179 = vmatprep.subr.mxu0 %v920
        %1180 = vmatpush1.msra.mxu0 %v919
        %1181 = vmatprep.subr.mxu0 %v918
        %1182 = vmatpush1.msra.mxu0 %v917
        %1183 = vmatprep.subr.mxu0 %v916
        %1184 = vmatpush1.msra.mxu0 %v915
        %1185 = vmatprep.subr.mxu0 %v914
        %1186 = vmatpush1.msra.mxu0 %v913
        %1187 = vmatprep.subr.mxu0 %v912
        %1188 = vmatpush1.msra.mxu0 %v911
        %1189 = vmatprep.subr.mxu0 %v910
        %1190 = vmatpush1.msra.mxu0 %v909
        %1191 = vmatprep.subr.mxu0 %v908
        %1192 = vmatpush1.msra.mxu0 %v907
        %1193 = vmatprep.subr.mxu0 %v906
        %1194 = vmatpush1.msra.mxu0 %v905
        %1195 = vmatprep.subr.mxu0 %v904
        %1196 = vmatpush1.msra.mxu0 %v903
        %1197 = vmatprep.subr.mxu0 %v902
        %1198 = vmatpush1.msra.mxu0 %v901
        %1199 = vmatprep.subr.mxu0 %v900
        %1200 = vmatpush1.msra.mxu0 %v899
        %1201 = vmatprep.subr.mxu0 %v898
        %1202 = vmatpush1.msra.mxu0 %v897
        %1203 = vmatprep.subr.mxu0 %v896
        %1204 = vmatpush1.msra.mxu0 %v895
        %1205 = vmatprep.subr.mxu0 %v894
        %1206 = vmatpush1.msra.mxu0 %v893
        %1207 = vmatprep.subr.mxu0 %v956
        %1208 = vmatpush2.msra.mxu0 %v955
        %1209 = vmatprep.subr.mxu0 %v954
        %1210 = vmatpush2.msra.mxu0 %v953
        %1211 = vmatprep.subr.mxu0 %v952
        %1212 = vmatpush2.msra.mxu0 %v951
        %1213 = vmatprep.subr.mxu0 %v950
        %1214 = vmatpush2.msra.mxu0 %v949
        %1215 = vmatprep.subr.mxu0 %v948
        %1216 = vmatpush2.msra.mxu0 %v947
        %1217 = vmatprep.subr.mxu0 %v946
        %1218 = vmatpush2.msra.mxu0 %v945
        %1219 = vmatprep.subr.mxu0 %v944
        %1220 = vmatpush2.msra.mxu0 %v943
        %1221 = vmatprep.subr.mxu0 %v942
        %1222 = vmatpush2.msra.mxu0 %v941
        %1223 = vmatprep.subr.mxu0 %v940
        %1224 = vmatpush2.msra.mxu0 %v939
        %1225 = vmatprep.subr.mxu0 %v938
        %1226 = vmatpush2.msra.mxu0 %v937
        %1227 = vmatprep.subr.mxu0 %v936
        %1228 = vmatpush2.msra.mxu0 %v935
        %1229 = vmatprep.subr.mxu0 %v934
        %1230 = vmatpush2.msra.mxu0 %v933
        %1231 = vmatprep.subr.mxu0 %v932
        %1232 = vmatpush2.msra.mxu0 %v931
        %1233 = vmatprep.subr.mxu0 %v930
        %1234 = vmatpush2.msra.mxu0 %v929
        %1235 = vmatprep.subr.mxu0 %v928
        %1236 = vmatpush2.msra.mxu0 %v927
        %1237 = vmatprep.subr.mxu0 %v926
        %1238 = vmatpush2.msra.mxu0 %v925
        %1239 = vmatprep.mubr.f32.mxu0 %v598
        %1240 = vmatmul.mubr.f32.gmra.mxu0 %v596
        %v1241 = vpop.f32.mrf.mxu0
        %v1242 = vadd.f32 %v1171, %v1241
        %v1243 = vpop.f32.mrf.mxu0
        %v1244 = vadd.f32 %v1173, %v1243
        %1245 = vdwg.mxu0
        %1246 = vmatprep.subr.mxu0 %v988
        %1247 = vmatpush1.msra.mxu0 %v987
        %1248 = vmatprep.subr.mxu0 %v986
        %1249 = vmatpush1.msra.mxu0 %v985
        %1250 = vmatprep.subr.mxu0 %v984
        %1251 = vmatpush1.msra.mxu0 %v983
        %1252 = vmatprep.subr.mxu0 %v982
        %1253 = vmatpush1.msra.mxu0 %v981
        %1254 = vmatprep.subr.mxu0 %v980
        %1255 = vmatpush1.msra.mxu0 %v979
        %1256 = vmatprep.subr.mxu0 %v978
        %1257 = vmatpush1.msra.mxu0 %v977
        %1258 = vmatprep.subr.mxu0 %v976
        %1259 = vmatpush1.msra.mxu0 %v975
        %1260 = vmatprep.subr.mxu0 %v974
        %1261 = vmatpush1.msra.mxu0 %v973
        %1262 = vmatprep.subr.mxu0 %v972
        %1263 = vmatpush1.msra.mxu0 %v971
        %1264 = vmatprep.subr.mxu0 %v970
        %1265 = vmatpush1.msra.mxu0 %v969
        %1266 = vmatprep.subr.mxu0 %v968
        %1267 = vmatpush1.msra.mxu0 %v967
        %1268 = vmatprep.subr.mxu0 %v966
        %1269 = vmatpush1.msra.mxu0 %v965
        %1270 = vmatprep.subr.mxu0 %v964
        %1271 = vmatpush1.msra.mxu0 %v963
        %1272 = vmatprep.subr.mxu0 %v962
        %1273 = vmatpush1.msra.mxu0 %v961
        %1274 = vmatprep.subr.mxu0 %v960
        %1275 = vmatpush1.msra.mxu0 %v959
        %1276 = vmatprep.subr.mxu0 %v958
        %1277 = vmatpush1.msra.mxu0 %v957
        %1278 = vmatprep.subr.mxu0 %v1020
        %1279 = vmatpush2.msra.mxu0 %v1019
        %1280 = vmatprep.subr.mxu0 %v1018
        %1281 = vmatpush2.msra.mxu0 %v1017
        %1282 = vmatprep.subr.mxu0 %v1016
        %1283 = vmatpush2.msra.mxu0 %v1015
        %1284 = vmatprep.subr.mxu0 %v1014
        %1285 = vmatpush2.msra.mxu0 %v1013
        %1286 = vmatprep.subr.mxu0 %v1012
        %1287 = vmatpush2.msra.mxu0 %v1011
        %1288 = vmatprep.subr.mxu0 %v1010
        %1289 = vmatpush2.msra.mxu0 %v1009
        %1290 = vmatprep.subr.mxu0 %v1008
        %1291 = vmatpush2.msra.mxu0 %v1007
        %1292 = vmatprep.subr.mxu0 %v1006
        %1293 = vmatpush2.msra.mxu0 %v1005
        %1294 = vmatprep.subr.mxu0 %v1004
        %1295 = vmatpush2.msra.mxu0 %v1003
        %1296 = vmatprep.subr.mxu0 %v1002
        %1297 = vmatpush2.msra.mxu0 %v1001
        %1298 = vmatprep.subr.mxu0 %v1000
        %1299 = vmatpush2.msra.mxu0 %v999
        %1300 = vmatprep.subr.mxu0 %v998
        %1301 = vmatpush2.msra.mxu0 %v997
        %1302 = vmatprep.subr.mxu0 %v996
        %1303 = vmatpush2.msra.mxu0 %v995
        %1304 = vmatprep.subr.mxu0 %v994
        %1305 = vmatpush2.msra.mxu0 %v993
        %1306 = vmatprep.subr.mxu0 %v992
        %1307 = vmatpush2.msra.mxu0 %v991
        %1308 = vmatprep.subr.mxu0 %v990
        %1309 = vmatpush2.msra.mxu0 %v989
        %1310 = vmatprep.mubr.f32.mxu0 %v675
        %1311 = vmatmul.mubr.f32.gmra.mxu0 %v673
        %v1312 = vpop.f32.mrf.mxu0
        %v1313 = vadd.f32 %v1242, %v1312
        %v1314 = vpop.f32.mrf.mxu0
        %v1315 = vadd.f32 %v1244, %v1314
        %1316 = vdwg.mxu0
        %v1317 = vmax.f32 %v1313, 0.0
        %v1318 = vmax.f32 %v1315, 0.0
        %v1319 = vmul.f32 %v1317, %v1317
        %v1320 = vmul.f32 %v1318, %v1318
        %v1321 = vadd.f32 %v1319, %v1320
        %1322 = vadd.xlane.f32.xlu0 %v1321
        %v1323 = vpop.xlane.xlu0 %1322
        %v1325 = vrot.slane %v1323, 2
        %v1327 = vadd.f32 %v1323, %v1325
        %v1328 = vrot.slane %v1323, 4
        %v1330 = vadd.f32 %v1327, %v1328
        %v1331 = vrot.slane %v1323, 6
        %v1333 = vadd.f32 %v1330, %v1331
        %v1334 = vmax.f32 %v1333, 1e-24
        %v1335 = vrsqrt.pop %v1334
        %1337 = vset.pattern.permute.xlu0 0
        %1338 = vperm.xlu0 %1337, %v1335
        %v1339 = vpop.permute.xlu0 %1338
        %v1341 = vmul.f32 %v1317, %v1339
        %v1342 = vmul.f32 %v1318, %v1339
        %v1345 = vcombine.low %v1341, %v1342
        %v1347 = vunpack.c.l.s4 1983009808
        %v1348 = vunpack.c.0.s8 %v1347
        %v1349 = vlaneseq
        %v1350 = vshrl.u32 %v1349, 7
        %v1351 = vsub.s32 %v1348, %v1350
        %v1352 = vrot.slane %v1345, %v1351
        %1354 = vst [vmem:[%s244 + $0x10] sm:$0xf] %v1352
        %v1355 = vrot.slane %v1339, 6
        %v1357 = vmul.f32 %v1317, %v1355
        %v1358 = vmul.f32 %v1318, %v1355
        %v1361 = vcombine.low %v1357, %v1358
        %v1363 = vunpack.c.l.s4 1983009808
        %v1364 = vunpack.c.0.s8 %v1363
        %v1365 = vlaneseq
        %v1366 = vshrl.u32 %v1365, 7
        %v1367 = vsub.s32 %v1364, %v1366
        %v1368 = vrot.slane %v1361, %v1367
        %v1369 = vcombine.high %v1368, %v1368
        %1371 = vst [vmem:[%s244 + $0x14] sm:$0xf] %v1369
        %v1372 = vrot.slane %v1339, 4
        %v1374 = vmul.f32 %v1317, %v1372
        %v1375 = vmul.f32 %v1318, %v1372
        %v1378 = vcombine.high %v1374, %v1375
        %v1380 = vunpack.c.l.s4 1983009808
        %v1381 = vunpack.c.0.s8 %v1380
        %v1382 = vlaneseq
        %v1383 = vshrl.u32 %v1382, 7
        %v1384 = vsub.s32 %v1381, %v1383
        %v1385 = vrot.slane %v1378, %v1384
        %1387 = vst [vmem:[%s244 + $0x18] sm:$0xf] %v1385
        %v1388 = vrot.slane %v1339, 2
        %v1390 = vmul.f32 %v1317, %v1388
        %v1391 = vmul.f32 %v1318, %v1388
        %v1394 = vcombine.high %v1390, %v1391
        %v1396 = vunpack.c.l.s4 1983009808
        %v1397 = vunpack.c.0.s8 %v1396
        %v1398 = vlaneseq
        %v1399 = vshrl.u32 %v1398, 7
        %v1400 = vsub.s32 %v1397, %v1399
        %v1401 = vrot.slane %v1394, %v1400
        %v1402 = vcombine.high %v1401, %v1401
        %1404 = vst [vmem:[%s244 + $0x1c] sm:$0xf] %v1402
        %s1405 = sand.u32 %s119, 1
        %s1406 = scalar_lea.sflag [#allocation4], %s1405
        %s1407 = sand.u32 %s119, 1
        %s1408 = smul.addr %s1407, 32
        %s1409 = scalar_lea.vmem [#allocation8], %s1408
        // Predicated region
        $region49: #{tpu_custom_call.1} parent=35 // pred_check
          %p1410 = pneg %p129
        $region50: #{tpu_custom_call.1} parent=35 // pred_check_branch
          %1412 = sbr.rel (%p1410) target = $region52
        $region51: #{tpu_custom_call.1} parent=35 // pred_region
          %s1414 = ssub.s32 512, 512
          %1415 = vsyncadd %s1406, %s1414
          %s1416 = smul.addr %s22, 16
          %s1417 = smul.addr %s1416, 32
          %s1418 = scalar_lea.hbm %s4, %s1417
          %s1420 = sshll.u32 %s1409, 4
          %s1421 = int_to_ptr.vmem [resolvable:$true] %s1420
          %1423 = dma.vmem_to_hbm [thread:$0]  %s1421, 512, %s1418, %s1406
        $region52: #{tpu_custom_call.1} parent=35 // pred_fallthru
          _
      $region36: #{tpu_custom_call.1} parent=5 // pred_fallthru
        _
      %p1424 = scmp.le.s32.totalorder 2, %s17
      // Predicated region
      $region53: #{tpu_custom_call.1} parent=5 // pred_check
        %p1425 = pneg %p1424
      $region54: #{tpu_custom_call.1} parent=5 // pred_check_branch
        %1427 = sbr.rel (%p1425) target = $region56
      $region55: #{tpu_custom_call.1} parent=5 // pred_region
        %s1428 = ssub.s32 %s17, 2
        // Predicated region
        $region57: #{tpu_custom_call.1} parent=55 // pred_check
          %p1429 = pneg %p135
        $region58: #{tpu_custom_call.1} parent=55 // pred_check_branch
          %1431 = sbr.rel (%p1429) target = $region60
        $region59: #{tpu_custom_call.1} parent=55 // pred_region
          %s1432 = sand.u32 %s120, 1
          %s1433 = scalar_lea.sflag [#allocation4], %s1432
          %s1434 = sand.u32 %s120, 1
          %s1435 = smul.addr %s1434, 32
          %s1436 = scalar_lea.vmem [#allocation8], %s1435
          %1437 = dma.done %s1433, 512
        $region60: #{tpu_custom_call.1} parent=55 // pred_fallthru
          _
      $region56: #{tpu_custom_call.1} parent=5 // pred_fallthru
        _
    $region6: #{tpu_custom_call.1} parent=1 // loop_footer
      %s21 = sadd.s32 1, %s17
    $region7: #{tpu_custom_call.1} parent=1 // loop_footer_branch
      %16 = sbr.rel target = $region3
    $region8: #{tpu_custom_call.1} parent=1 // loop_exit
      _
    %1438 = vsyncpa [#allocation3], 1
    %s1439 = scalar_lea.sflag [#allocation3], 1
    %1440 = vsyncpa %s1439, 1
    %1441 = vsyncpa [#allocation6], 1
    %1442 = vsyncpa [#allocation4], 1
    %s1443 = scalar_lea.sflag [#allocation4], 1
    %1444 = vsyncpa %s1443, 1

</llo_original>
